<compile_context>
chip_gen: v7x
topology: tpu7x:2x2x1
jax: 0.10.0
libtpu: 0.0.40
codegen_flags: <defaults>
</compile_context>

<pallas_src>
import math
import functools

import numpy as np
import jax
import jax.numpy as jnp
from jax.experimental import pallas as pl
from jax.experimental.pallas import tpu as pltpu

# ---------------- config (small, consistent with the module) ----------------
HIDDEN = 32          # hidden_size
HEAD = 8             # attention_head_size
NHEADS = 4           # num_attention_heads
QKV = HEAD * NHEADS  # 32
MLP = 64             # mlp_size
ZSIZE = 16           # z_size
NUM_LAYERS = 4
EPS = 1e-5           # norm_eps
ROPE_FRACTION = 2
ROPE_BASE = 10000.0
POSITION_SCALE = 1.0

BATCH = 2
SEQ = 8
BS = BATCH * SEQ          # flattened token count = 16
NROWS = NHEADS * BS       # head-stacked row count = 64

Z_SCALE = math.sqrt(1.0 / (ZSIZE * NUM_LAYERS))
SOFTPLUS_SHIFT = math.log(math.e - 1.0)
INV_SQRT_HEAD = 1.0 / math.sqrt(HEAD)

# canonical fused-up width (reference layout): [zp | q | k | v | g | val]
DUP = 2 * ZSIZE + 3 * QKV + 2 * MLP          # 256

# kernel-side fused-up layout (vreg aligned) + rope-rotated q/k columns
O_G, O_VAL, O_Q, O_K, O_V, O_ZP, O_QR, O_KR = 0, 64, 128, 160, 192, 224, 256, 288
DUP_K = 320
DDOWN = ZSIZE + QKV + MLP                    # 112

# misc slab rows: [w_down(0:112) | scale0 | bias0 | filt0 | dscale | dbias | dfilt | pad(2)]
E_SC0, E_B0, E_F0, E_DSC, E_DB, E_DF = DDOWN, DDOWN + 1, DDOWN + 2, DDOWN + 3, DDOWN + 4, DDOWN + 5
WMISC_ROWS = 120

# token slab: [x0(0:32) | fm(32) | pad]
TOK_W = 128

# attention constant slab (64, 256):
# [mask_bias(0:64) | cos_q*hm(64:96) | sin_q*hm(96:128) | cos_k(128:160) | sin_k(160:192) | hm(192:224) | pad]
C_AM, C_CQ, C_SQ, C_CK, C_SK, C_HM = 0, 64, 96, 128, 160, 192
CST_W = 256

# packed output layout: [h_out(32) | z(16) | noise(16) | mu(16) | sigma(16) | pad(32)]
OUT_W = 128
OH, OZ, ON, OMU, OSIG = 0, 32, 48, 64, 80


# ------------------------------- the kernel ---------------------------------
def _gen_stack_kernel(z_given,
                      tok_ref, cst_ref, zin_ref, wup_ref, wmisc_ref,
                      out_ref, hcar_ref):
    layer = pl.program_id(0)

    # hidden state is resident in VMEM scratch across the layer grid
    @pl.when(layer == 0)
    def _():
        hcar_ref[...] = tok_ref[:, 0:HIDDEN]

    x = hcar_ref[...]                                 # (BS, H)
    fm = tok_ref[:, HIDDEN:HIDDEN + 1]                # (BS, 1) float mask

    wmisc = wmisc_ref[0]                              # (120, 32)
    w_down = wmisc[0:DDOWN, :]                        # (112, 32)
    scale0 = wmisc[E_SC0:E_SC0 + 1, :]                # holds 1 + scale[0]
    bias0 = wmisc[E_B0:E_B0 + 1, :]
    filt0 = wmisc[E_F0:E_F0 + 1, :]
    dscale = wmisc[E_DSC:E_DSC + 1, :]                # scale[1] - scale[0]
    dbias = wmisc[E_DB:E_DB + 1, :]
    dfilt = wmisc[E_DF:E_DF + 1, :]

    # ---- ConditionalIO.enter: bias[mask] + (1 + scale[mask]) * LayerNorm(x) ----
    mean = jnp.mean(x, axis=-1, keepdims=True)
    var = jnp.mean(jnp.square(x - mean), axis=-1, keepdims=True)
    xn = (x - mean) * jax.lax.rsqrt(var + EPS)
    x_in = (bias0 + fm * dbias) + (scale0 + fm * dscale) * xn        # (BS, H)

    # ---- tile rows 4x (full-width sublane copies, no lane permutes) so one
    #      M=64 up matmul yields head-stacked q/k/v directly ----
    x_s = jnp.concatenate([x_in, x_in, x_in, x_in], axis=0)          # (64, H)
    u = jnp.dot(x_s, wup_ref[0], preferred_element_type=jnp.float32)  # (64, 320)

    g = u[0:BS, O_G:O_G + MLP]
    val = u[0:BS, O_VAL:O_VAL + MLP]
    zp = u[0:BS, O_ZP:O_ZP + 2 * ZSIZE]
    q_s = u[:, O_Q:O_Q + QKV]          # 1/sqrt(head) pre-folded into these cols
    k_s = u[:, O_K:O_K + QKV]
    v_s = u[:, O_V:O_V + QKV]
    qr_s = u[:, O_QR:O_QR + QKV]       # == q @ R (rotation folded into w_up)
    kr_s = u[:, O_KR:O_KR + QKV]

    # ---- latent parameters (Z_SCALE pre-folded into the zp columns) ----
    zp = fm * zp
    mu = zp[:, :ZSIZE]
    sigma = jax.nn.softplus(zp[:, ZSIZE:] + SOFTPLUS_SHIFT)
    zin = zin_ref[0]                                                 # (BS, Z)
    if z_given:
        z = zin * fm
        # hitch_z straight-through term is a forward-value no-op.
        noise = (z - mu) / sigma       # exact divide: returned tensor
    else:
        noise = zin * fm
        z = mu + sigma * noise

    # ---- RoPE on the head-stacked q/k; the per-head column mask is folded
    #      into the q-side cos/sin constants ----
    q_s = q_s * cst_ref[:, C_CQ:C_CQ + QKV] + qr_s * cst_ref[:, C_SQ:C_SQ + QKV]
    k_s = k_s * cst_ref[:, C_CK:C_CK + QKV] + kr_s * cst_ref[:, C_SK:C_SK + QKV]

    # ---- attention: all heads / batch elements in 2 MXU ops ----
    s = jax.lax.dot_general(q_s, k_s, (((1,), (1,)), ((), ())),
                            preferred_element_type=jnp.float32)     # (64, 64)
    s = s + cst_ref[:, C_AM:C_AM + NROWS]          # precomputed 0 / -1e30 bias
    m = jnp.max(s, axis=-1, keepdims=True)
    p = jnp.exp(s - m)
    p = p * pl.reciprocal(jnp.sum(p, axis=-1, keepdims=True), approx=True)
    a_s = jnp.dot(p, v_s, preferred_element_type=jnp.float32)       # (64, 32)
    a_s = a_s * cst_ref[:, C_HM:C_HM + QKV]        # keep each block's own head
    attn = (a_s[0:BS] + a_s[BS:2 * BS]) + (a_s[2 * BS:3 * BS] + a_s[3 * BS:4 * BS])

    # ---- GLU mlp ----
    mlp = jax.nn.silu(g) * val                                       # (BS, 64)

    # ---- single fused "down" projection ----
    down_in = jnp.concatenate([z, attn, mlp], axis=-1)               # (BS, 112)
    down = jnp.dot(down_in, w_down, preferred_element_type=jnp.float32)

    # ---- ConditionalIO.exit, carry update, lane-dense packed output ----
    h_out = x + (filt0 + fm * dfilt) * down
    hcar_ref[...] = h_out
    out_ref[0] = jnp.concatenate(
        [h_out, z, noise, mu, sigma,
         jnp.zeros((BS, OUT_W - OSIG - ZSIZE), jnp.float32)], axis=-1)  # (BS, 128)


# --------------------------- rope / constant setup ---------------------------
def make_rope(S):
    rope_dim = HEAD // ROPE_FRACTION
    cos_h = np.ones((S, HEAD), np.float32)
    sin_h = np.zeros((S, HEAD), np.float32)
    R_h = np.zeros((HEAD, HEAD), np.float32)
    if rope_dim > 0:
        half = rope_dim // 2
        inv_freq = 1.0 / (ROPE_BASE ** (np.arange(0, half, dtype=np.float32) * 2.0 / rope_dim))
        pos = np.arange(S, dtype=np.float32) * POSITION_SCALE
        ang = pos[:, None] * inv_freq[None, :]
        cos_h[:, :rope_dim] = np.concatenate([np.cos(ang), np.cos(ang)], axis=-1)
        sin_h[:, :rope_dim] = np.concatenate([np.sin(ang), np.sin(ang)], axis=-1)
        for j in range(half):
            R_h[j + half, j] = -1.0      # (x @ R)[:, j]      = -x[:, j+half]
            R_h[j, j + half] = 1.0       # (x @ R)[:, j+half] =  x[:, j]
    cos_full = np.tile(cos_h, (1, NHEADS))
    sin_full = np.tile(sin_h, (1, NHEADS))
    R_full = np.zeros((QKV, QKV), np.float32)
    for h in range(NHEADS):
        R_full[h * HEAD:(h + 1) * HEAD, h * HEAD:(h + 1) * HEAD] = R_h
    return jnp.asarray(cos_full), jnp.asarray(sin_full), jnp.asarray(R_full)


def build_attention_consts(cos_full, sin_full):
    """(64,256) constant slab: additive mask bias + head-stacked cos/sin + head mask."""
    cos_tok = np.tile(np.asarray(cos_full), (BATCH, 1))           # (BS, QKV)
    sin_tok = np.tile(np.asarray(sin_full), (BATCH, 1))
    hm = np.zeros((NROWS, QKV), np.float32)
    for h in range(NHEADS):
        hm[h * BS:(h + 1) * BS, h * HEAD:(h + 1) * HEAD] = 1.0
    cos_st = np.tile(cos_tok, (NHEADS, 1))                        # (64, QKV)
    sin_st = np.tile(sin_tok, (NHEADS, 1))
    ri = np.arange(NROWS)[:, None]
    ci = np.arange(NROWS)[None, :]
    valid = ((ri // BS) == (ci // BS))                    # same head block
    valid &= (((ri % BS) // SEQ) == ((ci % BS) // SEQ))   # same batch element
    valid &= ((ri % SEQ) >= (ci % SEQ))                   # causal
    amask = np.where(valid, 0.0, -1e30).astype(np.float32)
    cst = np.zeros((NROWS, CST_W), np.float32)
    cst[:, C_AM:C_AM + NROWS] = amask
    cst[:, C_CQ:C_CQ + QKV] = cos_st * hm
    cst[:, C_SQ:C_SQ + QKV] = sin_st * hm
    cst[:, C_CK:C_CK + QKV] = cos_st
    cst[:, C_SK:C_SK + QKV] = sin_st
    cst[:, C_HM:C_HM + QKV] = hm
    return jnp.asarray(cst)


# ---------------------- param folding (done once, host side) -----------------
def fold_params(params):
    """Repack canonical per-layer params into the kernel layout, pre-folding constants."""
    w = params["w_up"]                                   # (L, H, 256) = [zp|q|k|v|g|val]
    o = 0
    wzp = w[..., o:o + 2 * ZSIZE] * Z_SCALE; o += 2 * ZSIZE
    wq = w[..., o:o + QKV] * INV_SQRT_HEAD; o += QKV     # fold 1/sqrt(head_dim)
    wk = w[..., o:o + QKV]; o += QKV
    wv = w[..., o:o + QKV]; o += QKV
    wg = w[..., o:o + MLP]; o += MLP
    wval = w[..., o:o + MLP]
    rot = params["rot"]
    # kernel layout: [g | val | q | k | v | zp | q@R | k@R]
    w_up_k = jnp.concatenate([wg, wval, wq, wk, wv, wzp, wq @ rot, wk @ rot], axis=-1)

    scale, bias, filt = params["scale"], params["bias"], params["filter"]
    emb = jnp.stack([1.0 + scale[:, 0], bias[:, 0], filt[:, 0],
                     scale[:, 1] - scale[:, 0], bias[:, 1] - bias[:, 0],
                     filt[:, 1] - filt[:, 0]], axis=1)                      # (L, 6, H)
    pad = jnp.zeros((NUM_LAYERS, WMISC_ROWS - DDOWN - 6, HIDDEN), jnp.float32)
    w_misc = jnp.concatenate([params["wd_z"], params["wd_a"], params["wd_m"],
                              emb, pad], axis=1)                            # (L, 120, H)
    return {
        "w_up": w_up_k,                                                     # (L, 32, 320)
        "w_misc": w_misc,                                                   # (L, 120, 32)
        "cst": build_attention_consts(params["cos"], params["sin"]),        # (64, 256)
    }


# ------------------------------- wrapper -------------------------------------
def hlm_generator_stack(hidden, mask, kparams, *, z=None, noise=None):
    """Apply NUM_LAYERS HLmGeneratorLayers in one fused pallas_call (grid over layers)."""
    assert (z is None) != (noise is None)
    z_given = z is not None
    zin = z if z_given else noise                     # (L, B, S, Z)

    L = zin.shape[0]
    B, S, H = hidden.shape
    bs = B * S
    assert bs == BS and H == HIDDEN and L == NUM_LAYERS

    x2 = hidden.reshape(bs, H).astype(jnp.float32)
    fm2 = mask.astype(jnp.float32).reshape(bs, 1)
    tok = jnp.concatenate([x2, fm2, jnp.zeros((bs, TOK_W - H - 1), jnp.float32)], axis=-1)
    zin2 = zin.reshape(L, bs, ZSIZE).astype(jnp.float32)

    kernel = functools.partial(_gen_stack_kernel, z_given)

    grid_spec = pltpu.PrefetchScalarGridSpec(
        num_scalar_prefetch=0,
        grid=(L,),
        in_specs=[
            pl.BlockSpec((bs, TOK_W), lambda l: (0, 0)),            # token slab (once)
            pl.BlockSpec((NROWS, CST_W), lambda l: (0, 0)),          # attn consts (once)
            pl.BlockSpec((1, bs, ZSIZE), lambda l: (l, 0, 0)),       # per-layer z / noise
            pl.BlockSpec((1, HIDDEN, DUP_K), lambda l: (l, 0, 0)),   # per-layer fused up W
            pl.BlockSpec((1, WMISC_ROWS, HIDDEN), lambda l: (l, 0, 0)),  # per-layer down W + io emb
        ],
        out_specs=pl.BlockSpec((1, bs, OUT_W), lambda l: (l, 0, 0)),
        scratch_shapes=[pltpu.VMEM((bs, HIDDEN), jnp.float32)],      # resident hidden carry
    )

    out = pl.pallas_call(
        kernel,
        out_shape=jax.ShapeDtypeStruct((L, bs, OUT_W), jnp.float32),
        grid_spec=grid_spec,
        compiler_params=pltpu.CompilerParams(dimension_semantics=("arbitrary",)),
        cost_estimate=pl.CostEstimate(flops=2_000_000 * L,
                                      transcendentals=6_000 * L,
                                      bytes_accessed=120_000 * L),
    )(tok, kparams["cst"], zin2, kparams["w_up"], kparams["w_misc"])

    h_out = out[L - 1, :, OH:OH + HIDDEN].reshape(B, S, HIDDEN)
    z_out = out[:, :, OZ:OZ + ZSIZE].reshape(L, B, S, ZSIZE)
    n_out = out[:, :, ON:ON + ZSIZE].reshape(L, B, S, ZSIZE)
    mu = out[:, :, OMU:OMU + ZSIZE].reshape(L, B, S, ZSIZE)
    sigma = out[:, :, OSIG:OSIG + ZSIZE].reshape(L, B, S, ZSIZE)
    return h_out, z_out, n_out, mu, sigma


# --------------------------- parameter construction --------------------------
def make_params(S, key):
    ks = jax.random.split(key, 7)
    cos, sin, rot = make_rope(S)
    L = NUM_LAYERS
    # ConditionalIO.special_init zeroes scale/bias/filter; keep small random
    # values so the kernel exercises the full data path.
    return {
        "scale": 0.1 * jax.random.normal(ks[0], (L, 2, HIDDEN), jnp.float32),
        "bias": 0.1 * jax.random.normal(ks[1], (L, 2, HIDDEN), jnp.float32),
        "filter": 0.1 * jax.random.normal(ks[2], (L, 2, HIDDEN), jnp.float32),
        "w_up": jax.random.normal(ks[3], (L, HIDDEN, DUP), jnp.float32) / math.sqrt(HIDDEN),
        "wd_z": jax.random.normal(ks[4], (L, ZSIZE, HIDDEN), jnp.float32) / math.sqrt(DDOWN),
        "wd_a": jax.random.normal(ks[5], (L, QKV, HIDDEN), jnp.float32) / math.sqrt(DDOWN),
        "wd_m": jax.random.normal(ks[6], (L, MLP, HIDDEN), jnp.float32) / math.sqrt(DDOWN),
        "cos": cos, "sin": sin, "rot": rot,
    }


# --------------------------- pure-JAX reference -------------------------------
def reference_layer(hidden, mask, params, l, *, z=None, noise=None):
    B, S, H = hidden.shape
    fm = mask.astype(hidden.dtype)[..., None]
    mean = jnp.mean(hidden, -1, keepdims=True)
    var = jnp.mean((hidden - mean) ** 2, -1, keepdims=True)
    xn = (hidden - mean) * jax.lax.rsqrt(var + EPS)
    x_in = params["bias"][l][mask] + (1.0 + params["scale"][l][mask]) * xn
    u = x_in @ params["w_up"][l]
    o = 0
    zp = u[..., o:o + 2 * ZSIZE]; o += 2 * ZSIZE
    q = u[..., o:o + QKV]; o += QKV
    k = u[..., o:o + QKV]; o += QKV
    v = u[..., o:o + QKV]; o += QKV
    g = u[..., o:o + MLP]; o += MLP
    val = u[..., o:o + MLP]
    zp = fm * Z_SCALE * zp
    mu, log_sigma = zp[..., :ZSIZE], zp[..., ZSIZE:]
    sigma = jax.nn.softplus(log_sigma + SOFTPLUS_SHIFT)
    if z is None:
        noise = noise * fm
        zz = mu + sigma * noise
    else:
        zz = z * fm
        noise = (zz - mu) / sigma
    cos, sin, rot = params["cos"][None], params["sin"][None], params["rot"]
    q = q * cos + (q @ rot) * sin
    k = k * cos + (k @ rot) * sin
    qh = q.reshape(B, S, NHEADS, HEAD).transpose(0, 2, 1, 3)
    kh = k.reshape(B, S, NHEADS, HEAD).transpose(0, 2, 1, 3)
    vh = v.reshape(B, S, NHEADS, HEAD).transpose(0, 2, 1, 3)
    s = jnp.einsum("bhqd,bhkd->bhqk", qh, kh) / math.sqrt(HEAD)
    causal = (np.arange(S)[:, None] >= np.arange(S)[None, :])
    s = jnp.where(causal[None, None], s, -1e30)
    p = jax.nn.softmax(s, axis=-1)
    attn = jnp.einsum("bhqk,bhkd->bhqd", p, vh).transpose(0, 2, 1, 3).reshape(B, S, QKV)
    mlp = jax.nn.silu(g) * val
    down = zz @ params["wd_z"][l] + attn @ params["wd_a"][l] + mlp @ params["wd_m"][l]
    h_out = hidden + params["filter"][l][mask] * down
    return h_out, zz, noise, mu, sigma


def reference_stack(hidden, mask, params, *, z=None, noise=None):
    h = hidden
    zs, ns, mus, sgs = [], [], [], []
    for l in range(NUM_LAYERS):
        h, zl, nl, mul, sgl = reference_layer(
            h, mask, params, l,
            z=None if z is None else z[l],
            noise=None if noise is None else noise[l])
        zs.append(zl); ns.append(nl); mus.append(mul); sgs.append(sgl)
    return h, jnp.stack(zs), jnp.stack(ns), jnp.stack(mus), jnp.stack(sgs)


# ---------------------------------- main --------------------------------------
if __name__ == "__main__":
    key = jax.random.PRNGKey(0)
    k1, k2, k3, k4 = jax.random.split(key, 4)

    hidden = jax.random.normal(k1, (BATCH, SEQ, HIDDEN), jnp.float32)
    mask = jnp.array([[1, 1, 1, 1, 1, 1, 0, 0],
                      [1, 1, 1, 1, 0, 0, 0, 0]], dtype=jnp.int32)
    noise = jax.random.normal(k2, (NUM_LAYERS, BATCH, SEQ, ZSIZE), jnp.float32)
    z_in = jax.random.normal(k3, (NUM_LAYERS, BATCH, SEQ, ZSIZE), jnp.float32)

    params = make_params(SEQ, k4)
    kparams = fold_params(params)          # one-time weight repack / const fold

    # sampling path (noise given)
    outs_n = jax.block_until_ready(hlm_generator_stack(hidden, mask, kparams, noise=noise))
    refs_n = reference_stack(hidden, mask, params, noise=noise)

    # posterior path (z given)
    outs_z = jax.block_until_ready(hlm_generator_stack(hidden, mask, kparams, z=z_in))
    refs_z = reference_stack(hidden, mask, params, z=z_in)

    for got, ref in zip(list(outs_n) + list(outs_z), list(refs_n) + list(refs_z)):
        np.testing.assert_allclose(np.asarray(got), np.asarray(ref), rtol=1e-3, atol=1e-3)

    print("KERNEL_OK")
</pallas_src>

<mosaic_0001>
module attributes {stable_mosaic.version = 11 : i64} {
  func.func @_gen_stack_kernel(%arg0: i32, %arg1: memref<16x128xf32, #tpu.memory_space<vmem>>, %arg2: memref<64x256xf32, #tpu.memory_space<vmem>>, %arg3: memref<1x16x16xf32, #tpu.memory_space<vmem>>, %arg4: memref<1x32x320xf32, #tpu.memory_space<vmem>>, %arg5: memref<1x120x32xf32, #tpu.memory_space<vmem>>, %arg6: memref<1x16x128xf32, #tpu.memory_space<vmem>>, %arg7: memref<16x32xf32, #tpu.memory_space<vmem>>) attributes {dimension_semantics = [#tpu.dimension_semantics<arbitrary>], iteration_bounds = array<i64: 4>, scalar_prefetch = 0 : i64, scratch_operands = 1 : i64, tpu.core_type = #tpu.core_type<tc>, window_params = [{pipeline_mode = #tpu.pipeline_mode<synchronous>, transform_indices = @transform_0, window_bounds = array<i64: 16, 128>}, {pipeline_mode = #tpu.pipeline_mode<synchronous>, transform_indices = @transform_1, window_bounds = array<i64: 64, 256>}, {transform_indices = @transform_2, window_bounds = array<i64: 1, 16, 16>}, {transform_indices = @transform_3, window_bounds = array<i64: 1, 32, 320>}, {transform_indices = @transform_4, window_bounds = array<i64: 1, 120, 32>}, {transform_indices = @transform_5, window_bounds = array<i64: 1, 16, 128>}]} {
    %c0_i32 = arith.constant 0 : i32
    %0 = arith.cmpi eq, %arg0, %c0_i32 : i32
    %1 = arith.extui %0 : i1 to i32
    %c0_i32_0 = arith.constant 0 : i32
    %2 = arith.cmpi ne, %1, %c0_i32_0 : i32
    scf.if %2 {
      %c0_39 = arith.constant 0 : index
      %c0_40 = arith.constant 0 : index
      %137 = vector.load %arg1[%c0_39, %c0_40] : memref<16x128xf32, #tpu.memory_space<vmem>>, vector<16x32xf32>
      %c0_41 = arith.constant 0 : index
      %c0_42 = arith.constant 0 : index
      %138 = vector.load %arg7[%c0_41, %c0_42] : memref<16x32xf32, #tpu.memory_space<vmem>>, vector<16x32xf32>
      tpu.vector_store %arg7[%c0_41, %c0_42], %137 {strides = array<i32>} : memref<16x32xf32, #tpu.memory_space<vmem>>, vector<16x32xf32>,
    } else {
    }
    %c0 = arith.constant 0 : index
    %c0_1 = arith.constant 0 : index
    %3 = vector.load %arg7[%c0, %c0_1] : memref<16x32xf32, #tpu.memory_space<vmem>>, vector<16x32xf32>
    %c0_2 = arith.constant 0 : index
    %c32 = arith.constant 32 : index
    %4 = vector.load %arg1[%c0_2, %c32] : memref<16x128xf32, #tpu.memory_space<vmem>>, vector<16x1xf32>
    %c0_3 = arith.constant 0 : index
    %c0_4 = arith.constant 0 : index
    %c0_5 = arith.constant 0 : index
    %5 = vector.load %arg5[%c0_3, %c0_4, %c0_5] : memref<1x120x32xf32, #tpu.memory_space<vmem>>, vector<1x120x32xf32>
    %6 = vector.shape_cast %5 : vector<1x120x32xf32> to vector<120x32xf32>
    %7 = vector.extract_strided_slice %6 {offsets = [0, 0], sizes = [112, 32], strides = [1, 1]} : vector<120x32xf32> to vector<112x32xf32>
    %8 = vector.extract_strided_slice %6 {offsets = [112, 0], sizes = [1, 32], strides = [1, 1]} : vector<120x32xf32> to vector<1x32xf32>
    %9 = vector.extract_strided_slice %6 {offsets = [113, 0], sizes = [1, 32], strides = [1, 1]} : vector<120x32xf32> to vector<1x32xf32>
    %10 = vector.extract_strided_slice %6 {offsets = [114, 0], sizes = [1, 32], strides = [1, 1]} : vector<120x32xf32> to vector<1x32xf32>
    %11 = vector.extract_strided_slice %6 {offsets = [115, 0], sizes = [1, 32], strides = [1, 1]} : vector<120x32xf32> to vector<1x32xf32>
    %12 = vector.extract_strided_slice %6 {offsets = [116, 0], sizes = [1, 32], strides = [1, 1]} : vector<120x32xf32> to vector<1x32xf32>
    %13 = vector.extract_strided_slice %6 {offsets = [117, 0], sizes = [1, 32], strides = [1, 1]} : vector<120x32xf32> to vector<1x32xf32>
    %cst = arith.constant dense<0.000000e+00> : vector<16xf32>
    %14 = vector.multi_reduction <add>, %3, %cst [1] : vector<16x32xf32> to vector<16xf32>
    %15 = vector.shape_cast %14 : vector<16xf32> to vector<16x1xf32>
    %cst_6 = arith.constant 3.200000e+01 : f32
    %16 = vector.broadcast %cst_6 : f32 to vector<16x1xf32>
    %17 = arith.divf %15, %16 : vector<16x1xf32>
    %18 = vector.broadcast %17 : vector<16x1xf32> to vector<16x32xf32>
    %19 = arith.subf %3, %18 : vector<16x32xf32>
    %20 = arith.mulf %19, %19 : vector<16x32xf32>
    %cst_7 = arith.constant dense<0.000000e+00> : vector<16xf32>
    %21 = vector.multi_reduction <add>, %20, %cst_7 [1] : vector<16x32xf32> to vector<16xf32>
    %22 = vector.shape_cast %21 : vector<16xf32> to vector<16x1xf32>
    %cst_8 = arith.constant 3.200000e+01 : f32
    %23 = vector.broadcast %cst_8 : f32 to vector<16x1xf32>
    %24 = arith.divf %22, %23 : vector<16x1xf32>
    %25 = vector.broadcast %17 : vector<16x1xf32> to vector<16x32xf32>
    %26 = arith.subf %3, %25 : vector<16x32xf32>
    %cst_9 = arith.constant 9.99999974E-6 : f32
    %27 = vector.broadcast %cst_9 : f32 to vector<16x1xf32>
    %28 = arith.addf %24, %27 : vector<16x1xf32>
    %29 = math.rsqrt %28 : vector<16x1xf32>
    %30 = vector.broadcast %29 : vector<16x1xf32> to vector<16x32xf32>
    %31 = arith.mulf %26, %30 : vector<16x32xf32>
    %32 = vector.broadcast %4 : vector<16x1xf32> to vector<16x32xf32>
    %33 = vector.broadcast %12 : vector<1x32xf32> to vector<16x32xf32>
    %34 = arith.mulf %32, %33 : vector<16x32xf32>
    %35 = vector.broadcast %9 : vector<1x32xf32> to vector<16x32xf32>
    %36 = arith.addf %35, %34 : vector<16x32xf32>
    %37 = vector.broadcast %4 : vector<16x1xf32> to vector<16x32xf32>
    %38 = vector.broadcast %11 : vector<1x32xf32> to vector<16x32xf32>
    %39 = arith.mulf %37, %38 : vector<16x32xf32>
    %40 = vector.broadcast %8 : vector<1x32xf32> to vector<16x32xf32>
    %41 = arith.addf %40, %39 : vector<16x32xf32>
    %42 = arith.mulf %41, %31 : vector<16x32xf32>
    %43 = arith.addf %36, %42 : vector<16x32xf32>
    %44 = tpu.concatenate %43, %43, %43, %43 in 0 : vector<16x32xf32>, vector<16x32xf32>, vector<16x32xf32>, vector<16x32xf32> -> vector<64x32xf32>
    %c0_10 = arith.constant 0 : index
    %c0_11 = arith.constant 0 : index
    %c0_12 = arith.constant 0 : index
    %45 = vector.load %arg4[%c0_10, %c0_11, %c0_12] : memref<1x32x320xf32, #tpu.memory_space<vmem>>, vector<1x32x320xf32>
    %46 = vector.shape_cast %45 : vector<1x32x320xf32> to vector<32x320xf32>
    %cst_13 = arith.constant dense<0.000000e+00> : vector<64x320xf32>
    %47 = tpu.matmul %44, %46, %cst_13 {dimension_numbers = #tpu.dot_dimension_numbers<[1], [0], [0], [1], [0, 0, 1, 1], [], []>} : vector<64x32xf32>, vector<32x320xf32>, vector<64x320xf32> -> vector<64x320xf32>
    %48 = vector.extract_strided_slice %47 {offsets = [0, 0], sizes = [16, 64], strides = [1, 1]} : vector<64x320xf32> to vector<16x64xf32>
    %49 = vector.extract_strided_slice %47 {offsets = [0, 64], sizes = [16, 64], strides = [1, 1]} : vector<64x320xf32> to vector<16x64xf32>
    %50 = vector.extract_strided_slice %47 {offsets = [0, 224], sizes = [16, 32], strides = [1, 1]} : vector<64x320xf32> to vector<16x32xf32>
    %51 = vector.extract_strided_slice %47 {offsets = [0, 128], sizes = [64, 32], strides = [1, 1]} : vector<64x320xf32> to vector<64x32xf32>
    %52 = vector.extract_strided_slice %47 {offsets = [0, 160], sizes = [64, 32], strides = [1, 1]} : vector<64x320xf32> to vector<64x32xf32>
    %53 = vector.extract_strided_slice %47 {offsets = [0, 192], sizes = [64, 32], strides = [1, 1]} : vector<64x320xf32> to vector<64x32xf32>
    %54 = vector.extract_strided_slice %47 {offsets = [0, 256], sizes = [64, 32], strides = [1, 1]} : vector<64x320xf32> to vector<64x32xf32>
    %55 = vector.extract_strided_slice %47 {offsets = [0, 288], sizes = [64, 32], strides = [1, 1]} : vector<64x320xf32> to vector<64x32xf32>
    %56 = vector.broadcast %4 : vector<16x1xf32> to vector<16x32xf32>
    %57 = arith.mulf %56, %50 : vector<16x32xf32>
    %58 = vector.extract_strided_slice %57 {offsets = [0, 0], sizes = [16, 16], strides = [1, 1]} : vector<16x32xf32> to vector<16x16xf32>
    %59 = vector.extract_strided_slice %57 {offsets = [0, 16], sizes = [16, 16], strides = [1, 1]} : vector<16x32xf32> to vector<16x16xf32>
    %cst_14 = arith.constant 0.541324854 : f32
    %60 = vector.broadcast %cst_14 : f32 to vector<16x16xf32>
    %61 = arith.addf %59, %60 : vector<16x16xf32>
    %cst_15 = arith.constant 0.000000e+00 : f32
    %62 = vector.broadcast %cst_15 : f32 to vector<16x16xf32>
    %63 = arith.maximumf %61, %62 : vector<16x16xf32>
    %64 = vector.broadcast %cst_15 : f32 to vector<16x16xf32>
    %65 = arith.subf %61, %64 : vector<16x16xf32>
    %66 = arith.cmpf one, %65, %65 : vector<16x16xf32>
    %67 = vector.broadcast %cst_15 : f32 to vector<16x16xf32>
    %68 = arith.addf %61, %67 : vector<16x16xf32>
    %69 = math.absf %65 : vector<16x16xf32>
    %cst_16 = arith.constant 0.000000e+00 : f32
    %70 = vector.broadcast %cst_16 : f32 to vector<16x16xf32>
    %71 = arith.subf %70, %69 : vector<16x16xf32>
    %72 = math.exp %71 : vector<16x16xf32>
    %73 = math.log1p %72 : vector<16x16xf32>
    %74 = arith.addf %63, %73 : vector<16x16xf32>
    %75 = arith.select %66, %68, %74 : vector<16x16xi1>, vector<16x16xf32>
    %c0_17 = arith.constant 0 : index
    %c0_18 = arith.constant 0 : index
    %c0_19 = arith.constant 0 : index
    %76 = vector.load %arg3[%c0_17, %c0_18, %c0_19] : memref<1x16x16xf32, #tpu.memory_space<vmem>>, vector<1x16x16xf32>
    %77 = vector.shape_cast %76 : vector<1x16x16xf32> to vector<16x16xf32>
    %78 = vector.broadcast %4 : vector<16x1xf32> to vector<16x16xf32>
    %79 = arith.mulf %77, %78 : vector<16x16xf32>
    %80 = arith.mulf %75, %79 : vector<16x16xf32>
    %81 = arith.addf %58, %80 : vector<16x16xf32>
    %c0_20 = arith.constant 0 : index
    %c64 = arith.constant 64 : index
    %82 = vector.load %arg2[%c0_20, %c64] : memref<64x256xf32, #tpu.memory_space<vmem>>, vector<64x32xf32>
    %83 = arith.mulf %51, %82 : vector<64x32xf32>
    %c0_21 = arith.constant 0 : index
    %c96 = arith.constant 96 : index
    %84 = vector.load %arg2[%c0_21, %c96] : memref<64x256xf32, #tpu.memory_space<vmem>>, vector<64x32xf32>
    %85 = arith.mulf %54, %84 : vector<64x32xf32>
    %86 = arith.addf %83, %85 : vector<64x32xf32>
    %c0_22 = arith.constant 0 : index
    %c128 = arith.constant 128 : index
    %87 = vector.load %arg2[%c0_22, %c128] : memref<64x256xf32, #tpu.memory_space<vmem>>, vector<64x32xf32>
    %88 = arith.mulf %52, %87 : vector<64x32xf32>
    %c0_23 = arith.constant 0 : index
    %c160 = arith.constant 160 : index
    %89 = vector.load %arg2[%c0_23, %c160] : memref<64x256xf32, #tpu.memory_space<vmem>>, vector<64x32xf32>
    %90 = arith.mulf %55, %89 : vector<64x32xf32>
    %91 = arith.addf %88, %90 : vector<64x32xf32>
    %cst_24 = arith.constant dense<0.000000e+00> : vector<64x64xf32>
    %92 = tpu.matmul %86, %91, %cst_24 {dimension_numbers = #tpu.dot_dimension_numbers<[1], [1], [0], [0], [0, 0, 1, 0], [], []>} : vector<64x32xf32>, vector<64x32xf32>, vector<64x64xf32> -> vector<64x64xf32>
    %c0_25 = arith.constant 0 : index
    %c0_26 = arith.constant 0 : index
    %93 = vector.load %arg2[%c0_25, %c0_26] : memref<64x256xf32, #tpu.memory_space<vmem>>, vector<64x64xf32>
    %94 = arith.addf %92, %93 : vector<64x64xf32>
    %cst_27 = arith.constant dense<0xFF800000> : vector<64xf32>
    %95 = vector.multi_reduction <maximumf>, %94, %cst_27 [1] : vector<64x64xf32> to vector<64xf32>
    %96 = vector.shape_cast %95 : vector<64xf32> to vector<64x1xf32>
    %97 = vector.broadcast %96 : vector<64x1xf32> to vector<64x64xf32>
    %98 = arith.subf %94, %97 : vector<64x64xf32>
    %99 = math.exp %98 : vector<64x64xf32>
    %cst_28 = arith.constant dense<0.000000e+00> : vector<64xf32>
    %100 = vector.multi_reduction <add>, %99, %cst_28 [1] : vector<64x64xf32> to vector<64xf32>
    %101 = vector.shape_cast %100 : vector<64xf32> to vector<64x1xf32>
    %102 = tpu.reciprocal %101 {approx = true} : vector<64x1xf32> -> vector<64x1xf32>
    %103 = vector.broadcast %102 : vector<64x1xf32> to vector<64x64xf32>
    %104 = arith.mulf %99, %103 : vector<64x64xf32>
    %cst_29 = arith.constant dense<0.000000e+00> : vector<64x32xf32>
    %105 = tpu.matmul %104, %53, %cst_29 {dimension_numbers = #tpu.dot_dimension_numbers<[1], [0], [0], [1], [0, 0, 1, 1], [], []>} : vector<64x64xf32>, vector<64x32xf32>, vector<64x32xf32> -> vector<64x32xf32>
    %c0_30 = arith.constant 0 : index
    %c192 = arith.constant 192 : index
    %106 = vector.load %arg2[%c0_30, %c192] : memref<64x256xf32, #tpu.memory_space<vmem>>, vector<64x32xf32>
    %107 = arith.mulf %105, %106 : vector<64x32xf32>
    %108 = vector.extract_strided_slice %107 {offsets = [0, 0], sizes = [16, 32], strides = [1, 1]} : vector<64x32xf32> to vector<16x32xf32>
    %109 = vector.extract_strided_slice %107 {offsets = [16, 0], sizes = [16, 32], strides = [1, 1]} : vector<64x32xf32> to vector<16x32xf32>
    %110 = arith.addf %108, %109 : vector<16x32xf32>
    %111 = vector.extract_strided_slice %107 {offsets = [32, 0], sizes = [16, 32], strides = [1, 1]} : vector<64x32xf32> to vector<16x32xf32>
    %112 = vector.extract_strided_slice %107 {offsets = [48, 0], sizes = [16, 32], strides = [1, 1]} : vector<64x32xf32> to vector<16x32xf32>
    %113 = arith.addf %111, %112 : vector<16x32xf32>
    %114 = arith.addf %110, %113 : vector<16x32xf32>
    %115 = arith.negf %48 : vector<16x64xf32>
    %116 = math.exp %115 : vector<16x64xf32>
    %cst_31 = arith.constant 1.000000e+00 : f32
    %117 = vector.broadcast %cst_31 : f32 to vector<16x64xf32>
    %118 = arith.addf %117, %116 : vector<16x64xf32>
    %119 = arith.divf %117, %118 : vector<16x64xf32>
    %120 = arith.mulf %48, %119 : vector<16x64xf32>
    %121 = arith.mulf %120, %49 : vector<16x64xf32>
    %122 = tpu.concatenate %81, %114, %121 in 1 : vector<16x16xf32>, vector<16x32xf32>, vector<16x64xf32> -> vector<16x112xf32>
    %cst_32 = arith.constant dense<0.000000e+00> : vector<16x32xf32>
    %123 = tpu.matmul %122, %7, %cst_32 {dimension_numbers = #tpu.dot_dimension_numbers<[1], [0], [0], [1], [0, 0, 1, 1], [], []>} : vector<16x112xf32>, vector<112x32xf32>, vector<16x32xf32> -> vector<16x32xf32>
    %124 = vector.broadcast %4 : vector<16x1xf32> to vector<16x32xf32>
    %125 = vector.broadcast %13 : vector<1x32xf32> to vector<16x32xf32>
    %126 = arith.mulf %124, %125 : vector<16x32xf32>
    %127 = vector.broadcast %10 : vector<1x32xf32> to vector<16x32xf32>
    %128 = arith.addf %127, %126 : vector<16x32xf32>
    %129 = arith.mulf %128, %123 : vector<16x32xf32>
    %130 = arith.addf %3, %129 : vector<16x32xf32>
    %c0_33 = arith.constant 0 : index
    %c0_34 = arith.constant 0 : index
    %131 = vector.load %arg7[%c0_33, %c0_34] : memref<16x32xf32, #tpu.memory_space<vmem>>, vector<16x32xf32>
    tpu.vector_store %arg7[%c0_33, %c0_34], %130 {strides = array<i32>} : memref<16x32xf32, #tpu.memory_space<vmem>>, vector<16x32xf32>,
    %cst_35 = arith.constant 0.000000e+00 : f32
    %132 = vector.broadcast %cst_35 : f32 to vector<16x32xf32>
    %133 = tpu.concatenate %130, %81, %79, %58, %75, %132 in 1 : vector<16x32xf32>, vector<16x16xf32>, vector<16x16xf32>, vector<16x16xf32>, vector<16x16xf32>, vector<16x32xf32> -> vector<16x128xf32>
    %c0_36 = arith.constant 0 : index
    %c0_37 = arith.constant 0 : index
    %c0_38 = arith.constant 0 : index
    %134 = vector.load %arg6[%c0_36, %c0_37, %c0_38] : memref<1x16x128xf32, #tpu.memory_space<vmem>>, vector<1x16x128xf32>
    %135 = vector.shape_cast %134 : vector<1x16x128xf32> to vector<16x128xf32>
    %136 = vector.shape_cast %133 : vector<16x128xf32> to vector<1x16x128xf32>
    tpu.vector_store %arg6[%c0_36, %c0_37, %c0_38], %136 {strides = array<i32>} : memref<1x16x128xf32, #tpu.memory_space<vmem>>, vector<1x16x128xf32>,
    return
  }
  func.func @transform_0(%arg0: i32) -> (i32, i32) {
    %c0_i32 = arith.constant 0 : i32
    %c0_i32_0 = arith.constant 0 : i32
    %c0_i32_1 = arith.constant 0 : i32
    return %c0_i32, %c0_i32_0 : i32, i32
  }
  func.func @transform_1(%arg0: i32) -> (i32, i32) {
    %c0_i32 = arith.constant 0 : i32
    %c0_i32_0 = arith.constant 0 : i32
    %c0_i32_1 = arith.constant 0 : i32
    return %c0_i32, %c0_i32_0 : i32, i32
  }
  func.func @transform_2(%arg0: i32) -> (i32, i32, i32) {
    %c0_i32 = arith.constant 0 : i32
    %c0_i32_0 = arith.constant 0 : i32
    %c0_i32_1 = arith.constant 0 : i32
    return %arg0, %c0_i32, %c0_i32_0 : i32, i32, i32
  }
  func.func @transform_3(%arg0: i32) -> (i32, i32, i32) {
    %c0_i32 = arith.constant 0 : i32
    %c0_i32_0 = arith.constant 0 : i32
    %c0_i32_1 = arith.constant 0 : i32
    return %arg0, %c0_i32, %c0_i32_0 : i32, i32, i32
  }
  func.func @transform_4(%arg0: i32) -> (i32, i32, i32) {
    %c0_i32 = arith.constant 0 : i32
    %c0_i32_0 = arith.constant 0 : i32
    %c0_i32_1 = arith.constant 0 : i32
    return %arg0, %c0_i32, %c0_i32_0 : i32, i32, i32
  }
  func.func @transform_5(%arg0: i32) -> (i32, i32, i32) {
    %c0_i32 = arith.constant 0 : i32
    %c0_i32_0 = arith.constant 0 : i32
    %c0_i32_1 = arith.constant 0 : i32
    return %arg0, %c0_i32, %c0_i32_0 : i32, i32, i32
  }
}

</mosaic_0001>

<llo_original>
// kernel: tpu_custom_call.1
$region0: #{tpu_custom_call.1}
  #allocation0 [shape = 'u32[]', space=smem, size = 0x4, offset = 0x4, fixed_abs, tag = 'smem constant byte address 0x4 - core index']
  #allocation1 [shape = 'u32[144,128]{1,0:T(1,128)}', space=vmem, size = 0x12000, scoped, tag = 'internal scratch']
  #allocation2 [shape = 'f32[16,32]{1,0:T(8,128)}', space=vmem, size = 0x2000, scoped, tag = 'scratch operand']
  %s0 = inlined_call_operand.vmem [shape: f32[16,128], index: 0, kind: input, shape index: {}]
  %s1 = inlined_call_operand.vmem [shape: f32[64,256], index: 1, kind: input, shape index: {}]
  %s2 = inlined_call_operand.vmem [shape: f32[4,16,16], index: 2, kind: input, shape index: {}]
  %s3 = inlined_call_operand.vmem [shape: f32[4,32,320], index: 3, kind: input, shape index: {}]
  %s4 = inlined_call_operand.vmem [shape: f32[4,120,32], index: 4, kind: input, shape index: {}]
  %s5 = inlined_call_operand.hbm [shape: f32[4,16,128], index: 5, kind: output, shape index: {}]
  %s6 = sld [smem:[#allocation0]]
  $region57: #{tpu_custom_call.1} parent=0
    _
  %s8 = ssub.s32 1, %s6
  %s9 = scalar_select 0, %s8, %s6
  $region1: #{tpu_custom_call.1} parent=0
    #allocation3 [shape = 'u8[16384]{0}', space=vmem, size = 0x4000, scoped, tag = 'output window, operand 0']
    #allocation4 [shape = 's32[2]{0}', space=sflag, size = 0x8, scoped, tag = 'scoped memory for tpu_custom_call.1']
    %10 = vsyncpa [#allocation4], 0
    %s11 = scalar_lea.sflag [#allocation4], 1
    %12 = vsyncpa %s11, 0
    loop: start=0, step=1, limit=6
    $region2: #{tpu_custom_call.1} parent=1 // loop_pre_header
      _
    $region3: #{tpu_custom_call.1} parent=1 // loop_header
      %s14 = sphi 0, %s18
      %p15 = scmp.ge.s32.totalorder %s14, 6
      %s22 = sphi 0, %s22
      %s24 = sphi 0, %s22
      %s25 = sphi 0, %s24
      %s39 = sphi 0, %s25
      %s43 = sphi 0, %s43
      %s45 = sphi 0, %s43
      %s46 = sphi 0, %s45
      %s60 = sphi 0, %s46
      %s66 = sphi 0, %s68
      %s69 = sphi 0, %s66
      %s70 = sphi 0, %s69
      %s86 = sphi 0, %s70
      %s92 = sphi 0, %s94
      %s95 = sphi 0, %s92
      %s96 = sphi 0, %s95
      %s112 = sphi 0, %s96
      %s118 = sphi 0, %s120
      %s121 = sphi 0, %s118
      %s122 = sphi 0, %s121
      %s138 = sphi 0, %s122
      %s144 = sphi 0, %s146
      %s147 = sphi 0, %s144
      %s148 = sphi 0, %s147
      %s164 = sphi 0, %s148
    $region4: #{tpu_custom_call.1} parent=1 // loop_header_branch
      %17 = sbr.rel (%p15) target = $region8
    $region5: #{tpu_custom_call.1} parent=1 // loop_body
      %s19 = ssub.s32 %s14, 1
      %s20 = ssub.s32 %s14, 2
      %s21 = sadd.s32 %s14, 1
      %s23 = sadd.s32 %s22, 1
      %p26 = scmp.eq.s32.totalorder %s14, 3
      %p27 = scmp.ne.s32.totalorder %s22, %s24
      %p28 = scmp.eq.s32.totalorder %s14, 0
      %p29 = por %p27, %p28
      %p30 = scmp.ne.s32.totalorder %s22, %s24
      %p31 = scmp.eq.s32.totalorder %s19, 3
      %p32 = por %p30, %p31
      %p33 = scmp.ne.s32.totalorder %s24, %s25
      %p34 = scmp.eq.s32.totalorder %s19, 0
      %p35 = por %p33, %p34
      %p36 = scmp.ne.s32.totalorder %s24, %s25
      %p37 = scmp.eq.s32.totalorder %s20, 3
      %p38 = por %p36, %p37
      %p40 = scmp.ne.s32.totalorder %s25, %s39
      %p41 = scmp.eq.s32.totalorder %s20, 0
      %p42 = por %p40, %p41
      %s44 = sadd.s32 %s43, 1
      %p47 = scmp.eq.s32.totalorder %s14, 3
      %p48 = scmp.ne.s32.totalorder %s43, %s45
      %p49 = scmp.eq.s32.totalorder %s14, 0
      %p50 = por %p48, %p49
      %p51 = scmp.ne.s32.totalorder %s43, %s45
      %p52 = scmp.eq.s32.totalorder %s19, 3
      %p53 = por %p51, %p52
      %p54 = scmp.ne.s32.totalorder %s45, %s46
      %p55 = scmp.eq.s32.totalorder %s19, 0
      %p56 = por %p54, %p55
      %p57 = scmp.ne.s32.totalorder %s45, %s46
      %p58 = scmp.eq.s32.totalorder %s20, 3
      %p59 = por %p57, %p58
      %p61 = scmp.ne.s32.totalorder %s46, %s60
      %p62 = scmp.eq.s32.totalorder %s20, 0
      %p63 = por %p61, %p62
      %s64 = ssub.s32 %s14, %s21
      %p65 = scmp.eq.s32.totalorder %s64, 0
      %s67 = sadd.s32 %s66, 1
      %s68 = scalar_select %p65, %s66, %s67
      %p71 = pneg %p65
      %p72 = scmp.eq.s32.totalorder %s14, 3
      %p73 = por %p71, %p72
      %p74 = scmp.ne.s32.totalorder %s66, %s69
      %p75 = scmp.eq.s32.totalorder %s14, 0
      %p76 = por %p74, %p75
      %p77 = scmp.ne.s32.totalorder %s66, %s69
      %p78 = scmp.eq.s32.totalorder %s19, 3
      %p79 = por %p77, %p78
      %p80 = scmp.ne.s32.totalorder %s69, %s70
      %p81 = scmp.eq.s32.totalorder %s19, 0
      %p82 = por %p80, %p81
      %p83 = scmp.ne.s32.totalorder %s69, %s70
      %p84 = scmp.eq.s32.totalorder %s20, 3
      %p85 = por %p83, %p84
      %p87 = scmp.ne.s32.totalorder %s70, %s86
      %p88 = scmp.eq.s32.totalorder %s20, 0
      %p89 = por %p87, %p88
      %s90 = ssub.s32 %s14, %s21
      %p91 = scmp.eq.s32.totalorder %s90, 0
      %s93 = sadd.s32 %s92, 1
      %s94 = scalar_select %p91, %s92, %s93
      %p97 = pneg %p91
      %p98 = scmp.eq.s32.totalorder %s14, 3
      %p99 = por %p97, %p98
      %p100 = scmp.ne.s32.totalorder %s92, %s95
      %p101 = scmp.eq.s32.totalorder %s14, 0
      %p102 = por %p100, %p101
      %p103 = scmp.ne.s32.totalorder %s92, %s95
      %p104 = scmp.eq.s32.totalorder %s19, 3
      %p105 = por %p103, %p104
      %p106 = scmp.ne.s32.totalorder %s95, %s96
      %p107 = scmp.eq.s32.totalorder %s19, 0
      %p108 = por %p106, %p107
      %p109 = scmp.ne.s32.totalorder %s95, %s96
      %p110 = scmp.eq.s32.totalorder %s20, 3
      %p111 = por %p109, %p110
      %p113 = scmp.ne.s32.totalorder %s96, %s112
      %p114 = scmp.eq.s32.totalorder %s20, 0
      %p115 = por %p113, %p114
      %s116 = ssub.s32 %s14, %s21
      %p117 = scmp.eq.s32.totalorder %s116, 0
      %s119 = sadd.s32 %s118, 1
      %s120 = scalar_select %p117, %s118, %s119
      %p123 = pneg %p117
      %p124 = scmp.eq.s32.totalorder %s14, 3
      %p125 = por %p123, %p124
      %p126 = scmp.ne.s32.totalorder %s118, %s121
      %p127 = scmp.eq.s32.totalorder %s14, 0
      %p128 = por %p126, %p127
      %p129 = scmp.ne.s32.totalorder %s118, %s121
      %p130 = scmp.eq.s32.totalorder %s19, 3
      %p131 = por %p129, %p130
      %p132 = scmp.ne.s32.totalorder %s121, %s122
      %p133 = scmp.eq.s32.totalorder %s19, 0
      %p134 = por %p132, %p133
      %p135 = scmp.ne.s32.totalorder %s121, %s122
      %p136 = scmp.eq.s32.totalorder %s20, 3
      %p137 = por %p135, %p136
      %p139 = scmp.ne.s32.totalorder %s122, %s138
      %p140 = scmp.eq.s32.totalorder %s20, 0
      %p141 = por %p139, %p140
      %s142 = ssub.s32 %s14, %s21
      %p143 = scmp.eq.s32.totalorder %s142, 0
      %s145 = sadd.s32 %s144, 1
      %s146 = scalar_select %p143, %s144, %s145
      %p149 = pneg %p143
      %p150 = scmp.eq.s32.totalorder %s14, 3
      %p151 = por %p149, %p150
      %p152 = scmp.ne.s32.totalorder %s144, %s147
      %p153 = scmp.eq.s32.totalorder %s14, 0
      %p154 = por %p152, %p153
      %p155 = scmp.ne.s32.totalorder %s144, %s147
      %p156 = scmp.eq.s32.totalorder %s19, 3
      %p157 = por %p155, %p156
      %p158 = scmp.ne.s32.totalorder %s147, %s148
      %p159 = scmp.eq.s32.totalorder %s19, 0
      %p160 = por %p158, %p159
      %p161 = scmp.ne.s32.totalorder %s147, %s148
      %p162 = scmp.eq.s32.totalorder %s20, 3
      %p163 = por %p161, %p162
      %p165 = scmp.ne.s32.totalorder %s148, %s164
      %p166 = scmp.eq.s32.totalorder %s20, 0
      %p167 = por %p165, %p166
      %p168 = scmp.le.s32.totalorder 1, %s14
      %p169 = scmp.lt.s32.totalorder %s14, 5
      %p170 = pnand %p168, %p169
      %p171 = pneg %p170
      // Predicated region
      $region9: #{tpu_custom_call.1} parent=5 // pred_check
        _
      $region10: #{tpu_custom_call.1} parent=5 // pred_check_branch
        %173 = sbr.rel (%p170) target = $region12
      $region11: #{tpu_custom_call.1} parent=5 // pred_region
        %s174 = ssub.s32 %s14, 1
        // Predicated region
        $region13: #{tpu_custom_call.1} parent=11 // pred_check
          %p175 = pneg %p35
        $region14: #{tpu_custom_call.1} parent=11 // pred_check_branch
          %177 = sbr.rel (%p175) target = $region16
        $region15: #{tpu_custom_call.1} parent=11 // pred_region
          _
        $region16: #{tpu_custom_call.1} parent=11 // pred_fallthru
          _
        // Predicated region
        $region17: #{tpu_custom_call.1} parent=11 // pred_check
          %p178 = pneg %p56
        $region18: #{tpu_custom_call.1} parent=11 // pred_check_branch
          %180 = sbr.rel (%p178) target = $region20
        $region19: #{tpu_custom_call.1} parent=11 // pred_region
          _
        $region20: #{tpu_custom_call.1} parent=11 // pred_fallthru
          _
      $region12: #{tpu_custom_call.1} parent=5 // pred_fallthru
        _
      %p181 = scmp.lt.s32.totalorder %s14, 4
      // Predicated region
      $region21: #{tpu_custom_call.1} parent=5 // pred_check
        %p182 = pneg %p181
      $region22: #{tpu_custom_call.1} parent=5 // pred_check_branch
        %184 = sbr.rel (%p182) target = $region24
      $region23: #{tpu_custom_call.1} parent=5 // pred_region
        // Predicated region
        $region25: #{tpu_custom_call.1} parent=23 // pred_check
          %p185 = pneg %p76
        $region26: #{tpu_custom_call.1} parent=23 // pred_check_branch
          %187 = sbr.rel (%p185) target = $region28
        $region27: #{tpu_custom_call.1} parent=23 // pred_region
          %p188 = scmp.lt.s32.totalorder %s14, 3
          %s189 = scalar_select %p188, %s14, 3
          %s190 = smul.addr %s189, 2
          %s191 = smul.addr %s190, 8
          %s192 = scalar_lea.vmem %s2, %s191
        $region28: #{tpu_custom_call.1} parent=23 // pred_fallthru
          _
        // Predicated region
        $region29: #{tpu_custom_call.1} parent=23 // pred_check
          %p193 = pneg %p102
        $region30: #{tpu_custom_call.1} parent=23 // pred_check_branch
          %195 = sbr.rel (%p193) target = $region32
        $region31: #{tpu_custom_call.1} parent=23 // pred_region
          %p196 = scmp.lt.s32.totalorder %s14, 3
          %s197 = scalar_select %p196, %s14, 3
          %s198 = smul.addr %s197, 12
          %s199 = smul.addr %s198, 8
          %s200 = scalar_lea.vmem %s3, %s199
        $region32: #{tpu_custom_call.1} parent=23 // pred_fallthru
          _
        // Predicated region
        $region33: #{tpu_custom_call.1} parent=23 // pred_check
          %p201 = pneg %p128
        $region34: #{tpu_custom_call.1} parent=23 // pred_check_branch
          %203 = sbr.rel (%p201) target = $region36
        $region35: #{tpu_custom_call.1} parent=23 // pred_region
          %p204 = scmp.lt.s32.totalorder %s14, 3
          %s205 = scalar_select %p204, %s14, 3
          %s206 = smul.addr %s205, 15
          %s207 = smul.addr %s206, 8
          %s208 = scalar_lea.vmem %s4, %s207
        $region36: #{tpu_custom_call.1} parent=23 // pred_fallthru
          _
      $region24: #{tpu_custom_call.1} parent=5 // pred_fallthru
        _
      %p209 = scmp.le.s32.totalorder 1, %s14
      %p210 = scmp.lt.s32.totalorder %s14, 5
      %p211 = pnand %p209, %p210
      %p212 = pneg %p211
      // Predicated region
      $region37: #{tpu_custom_call.1} parent=5 // pred_check
        _
      $region38: #{tpu_custom_call.1} parent=5 // pred_check_branch
        %214 = sbr.rel (%p211) target = $region40
      $region39: #{tpu_custom_call.1} parent=5 // pred_region
        %s215 = ssub.s32 %s14, 1
        %p216 = pneg %p35
        %p217 = pneg %p32
        %p218 = pneg %p56
        %p219 = pneg %p53
        %p220 = scmp.lt.s32.totalorder %s19, 3
        %s221 = scalar_select %p220, %s19, 3
        %s222 = smul.addr %s221, 2
        %s223 = smul.addr %s222, 8
        %s224 = scalar_lea.vmem %s2, %s223
        %p225 = pneg %p82
        %p226 = pneg %p79
        %p227 = scmp.lt.s32.totalorder %s19, 3
        %s228 = scalar_select %p227, %s19, 3
        %s229 = smul.addr %s228, 12
        %s230 = smul.addr %s229, 8
        %s231 = scalar_lea.vmem %s3, %s230
        %p232 = pneg %p108
        %p233 = pneg %p105
        %p234 = scmp.lt.s32.totalorder %s19, 3
        %s235 = scalar_select %p234, %s19, 3
        %s236 = smul.addr %s235, 15
        %s237 = smul.addr %s236, 8
        %s238 = scalar_lea.vmem %s4, %s237
        %p239 = pneg %p134
        %p240 = pneg %p131
        %p241 = pneg %p160
        %p242 = pneg %p157
        %s243 = sand.u32 %s147, 1
        %s244 = scalar_lea.sflag [#allocation4], %s243
        %s245 = sand.u32 %s147, 1
        %s246 = smul.addr %s245, 16
        %s247 = scalar_lea.vmem [#allocation3], %s246
        %p248 = scmp.lt.s32.totalorder %s19, 3
        %s249 = scalar_select %p248, %s19, 3
        %s250 = smul.addr %s249, 2
        %s251 = smul.addr %s250, 8
        %s252 = scalar_lea.vmem %s2, %s251
        %p253 = scmp.lt.s32.totalorder %s19, 3
        %s254 = scalar_select %p253, %s19, 3
        %s255 = smul.addr %s254, 12
        %s256 = smul.addr %s255, 8
        %s257 = scalar_lea.vmem %s3, %s256
        %p258 = scmp.lt.s32.totalorder %s19, 3
        %s259 = scalar_select %p258, %s19, 3
        %s260 = smul.addr %s259, 15
        %s261 = smul.addr %s260, 8
        %s262 = scalar_lea.vmem %s4, %s261
        %p263 = scmp.eq.s32.totalorder %s19, 0
        // Predicated region
        $region41: #{tpu_custom_call.1} parent=39 // pred_check
          %p264 = pneg %p263
        $region42: #{tpu_custom_call.1} parent=39 // pred_check_branch
          %266 = sbr.rel (%p264) target = $region44
        $region43: #{tpu_custom_call.1} parent=39 // pred_region
          %v267 = vld [vmem:[%s0] sm:$0xff]
          %v268 = vld [vmem:[%s0 + $0x8] sm:$0xff]
          %vm269 = vcmask 261120
          %270 = vst.msk [vmem:[#allocation2] sm:$0xff] %vm269, %v267
          %271 = vst.msk [vmem:[#allocation2 + $0x8] sm:$0xff] %vm269, %v268
        $region44: #{tpu_custom_call.1} parent=39 // pred_fallthru
          _
        %v272 = vld [vmem:[#allocation2] sm:$0xff]
        %v273 = vld [vmem:[#allocation2 + $0x8] sm:$0xff]
        %v274 = vld [vmem:[%s0] sm:$0xff]
        %v275 = vld [vmem:[%s0 + $0x8] sm:$0xff]
        %v276 = vld [vmem:[%s262] sm:$0xff]
        %v277 = vld [vmem:[%s262 + $0x8] sm:$0xff]
        %v278 = vld [vmem:[%s262 + $0x10] sm:$0xff]
        %v279 = vld [vmem:[%s262 + $0x18] sm:$0xff]
        %v280 = vld [vmem:[%s262 + $0x20] sm:$0xff]
        %v281 = vld [vmem:[%s262 + $0x28] sm:$0xff]
        %v282 = vld [vmem:[%s262 + $0x30] sm:$0xff]
        %v283 = vld [vmem:[%s262 + $0x38] sm:$0xff]
        %v284 = vld [vmem:[%s262 + $0x40] sm:$0xff]
        %v285 = vld [vmem:[%s262 + $0x48] sm:$0xff]
        %v286 = vld [vmem:[%s262 + $0x50] sm:$0xff]
        %v287 = vld [vmem:[%s262 + $0x58] sm:$0xff]
        %v288 = vld [vmem:[%s262 + $0x60] sm:$0xff]
        %v289 = vld [vmem:[%s262 + $0x68] sm:$0xff]
        %v290 = vld [vmem:[%s262 + $0x70] sm:$0xff]
        %vm291 = vcmask 261120
        %v292 = vsel %vm291, %v272, 0.0
        %293 = vadd.xlane.f32.xlu0 %v292
        %v294 = vpop.xlane.xlu0 %293
        %v295 = vsel %vm291, %v273, 0.0
        %296 = vadd.xlane.f32.xlu0 %v295
        %v297 = vpop.xlane.xlu0 %296
        %v298 = vrcp.pop 32.0
        %v299 = vmul.f32 %v294, %v298
        %v300 = vmul.f32 %v297, %v298
        %v301 = vsub.f32 %v272, %v299
        %v302 = vsub.f32 %v273, %v300
        %v303 = vmul.f32 %v301, %v301
        %v304 = vmul.f32 %v302, %v302
        %v305 = vsel %vm291, %v303, 0.0
        %306 = vadd.xlane.f32.xlu0 %v305
        %v307 = vpop.xlane.xlu0 %306
        %v308 = vsel %vm291, %v304, 0.0
        %309 = vadd.xlane.f32.xlu0 %v308
        %v310 = vpop.xlane.xlu0 %309
        %v311 = vmul.f32 %v307, %v298
        %v312 = vmul.f32 %v310, %v298
        %v313 = vadd.f32 %v311, 1e-05
        %v314 = vadd.f32 %v312, 1e-05
        %v315 = vrsqrt.pop %v313
        %v316 = vrsqrt.pop %v314
        %v317 = vmul.f32 %v301, %v315
        %v318 = vmul.f32 %v302, %v316
        %320 = vset.pattern.permute.xlu0 32
        %321 = vperm.xlu0 %320, %v274
        %v322 = vpop.permute.xlu0 %321
        %325 = vset.pattern.permute.xlu0 32
        %326 = vperm.xlu0 %325, %v275
        %v327 = vpop.permute.xlu0 %326
        %v329 = vlaneseq
        %v330 = vshrl.u32 %v329, 7
        %v331 = vsub.s32 4, %v330
        %v332 = vrot.slane %v290, %v331
        %v333 = vmul.f32 %v322, %v332
        %v334 = vmul.f32 %v327, %v332
        %v335 = vlaneseq
        %v336 = vshrl.u32 %v335, 7
        %v337 = vsub.s32 1, %v336
        %v338 = vrot.slane %v290, %v337
        %v339 = vadd.f32 %v338, %v333
        %v340 = vadd.f32 %v338, %v334
        %v341 = vlaneseq
        %v342 = vshrl.u32 %v341, 7
        %v343 = vsub.s32 3, %v342
        %v344 = vrot.slane %v290, %v343
        %v345 = vmul.f32 %v322, %v344
        %v346 = vmul.f32 %v327, %v344
        %v347 = vlaneseq
        %v348 = vshrl.u32 %v347, 7
        %v349 = vsub.s32 0, %v348
        %v350 = vrot.slane %v290, %v349
        %v351 = vadd.f32 %v350, %v345
        %v352 = vadd.f32 %v350, %v346
        %v353 = vmul.f32 %v351, %v317
        %v354 = vmul.f32 %v352, %v318
        %v355 = vadd.f32 %v339, %v353
        %v356 = vadd.f32 %v340, %v354
        %v357 = vld [vmem:[%s257] sm:$0xff]
        %v358 = vld [vmem:[%s257 + $0x8] sm:$0xff]
        %v359 = vld [vmem:[%s257 + $0x10] sm:$0xff]
        %v360 = vld [vmem:[%s257 + $0x18] sm:$0xff]
        %v361 = vld [vmem:[%s257 + $0x20] sm:$0xff]
        %v362 = vld [vmem:[%s257 + $0x28] sm:$0xff]
        %v363 = vld [vmem:[%s257 + $0x30] sm:$0xff]
        %v364 = vld [vmem:[%s257 + $0x38] sm:$0xff]
        %v365 = vld [vmem:[%s257 + $0x40] sm:$0xff]
        %v366 = vld [vmem:[%s257 + $0x48] sm:$0xff]
        %v367 = vld [vmem:[%s257 + $0x50] sm:$0xff]
        %v368 = vld [vmem:[%s257 + $0x58] sm:$0xff]
        %v370 = vsel %vm291, %v355, 0
        %v373 = vsel %vm291, %v356, 0
        %375 = vmatprep.subr.mxu0 %v358
        %376 = vmatpush1.msra.mxu0 %v357
        %377 = vmatprep.subr.mxu0 %v361
        %378 = vmatpush1.msra.mxu0 %v360
        %379 = vmatprep.subr.mxu0 %v364
        %380 = vmatpush1.msra.mxu0 %v363
        %381 = vmatprep.subr.mxu0 %v367
        %382 = vmatpush1.msra.mxu0 %v366
        %383 = vmatprep.subr.mxu0 0.0
        %384 = vmatpush1.msra.mxu0 0.0
        %385 = vmatprep.subr.mxu0 0.0
        %386 = vmatpush1.msra.mxu0 0.0
        %387 = vmatprep.subr.mxu0 0.0
        %388 = vmatpush1.msra.mxu0 0.0
        %389 = vmatprep.subr.mxu0 0.0
        %390 = vmatpush1.msra.mxu0 0.0
        %391 = vmatprep.subr.mxu0 0.0
        %392 = vmatpush1.msra.mxu0 0.0
        %393 = vmatprep.subr.mxu0 0.0
        %394 = vmatpush1.msra.mxu0 0.0
        %395 = vmatprep.subr.mxu0 0.0
        %396 = vmatpush1.msra.mxu0 0.0
        %397 = vmatprep.subr.mxu0 0.0
        %398 = vmatpush1.msra.mxu0 0.0
        %399 = vmatprep.subr.mxu0 0.0
        %400 = vmatpush1.msra.mxu0 0.0
        %401 = vmatprep.subr.mxu0 0.0
        %402 = vmatpush1.msra.mxu0 0.0
        %403 = vmatprep.subr.mxu0 0.0
        %404 = vmatpush1.msra.mxu0 0.0
        %405 = vmatprep.subr.mxu0 0.0
        %406 = vmatpush1.msra.mxu0 0.0
        %407 = vmatprep.subr.mxu0 0.0
        %408 = vmatpush1.msra.mxu0 0.0
        %409 = vmatprep.subr.mxu0 0.0
        %410 = vmatpush1.msra.mxu0 0.0
        %411 = vmatprep.subr.mxu0 0.0
        %412 = vmatpush1.msra.mxu0 0.0
        %413 = vmatprep.subr.mxu0 0.0
        %414 = vmatpush1.msra.mxu0 0.0
        %415 = vmatprep.subr.mxu0 0.0
        %416 = vmatpush1.msra.mxu0 0.0
        %417 = vmatprep.subr.mxu0 0.0
        %418 = vmatpush1.msra.mxu0 0.0
        %419 = vmatprep.subr.mxu0 0.0
        %420 = vmatpush1.msra.mxu0 0.0
        %421 = vmatprep.subr.mxu0 0.0
        %422 = vmatpush1.msra.mxu0 0.0
        %423 = vmatprep.subr.mxu0 0.0
        %424 = vmatpush1.msra.mxu0 0.0
        %425 = vmatprep.subr.mxu0 0.0
        %426 = vmatpush1.msra.mxu0 0.0
        %427 = vmatprep.subr.mxu0 0.0
        %428 = vmatpush1.msra.mxu0 0.0
        %429 = vmatprep.subr.mxu0 0.0
        %430 = vmatpush1.msra.mxu0 0.0
        %431 = vmatprep.subr.mxu0 0.0
        %432 = vmatpush1.msra.mxu0 0.0
        %433 = vmatprep.subr.mxu0 0.0
        %434 = vmatpush1.msra.mxu0 0.0
        %435 = vmatprep.subr.mxu0 0.0
        %436 = vmatpush1.msra.mxu0 0.0
        %437 = vmatprep.subr.mxu0 0.0
        %438 = vmatpush1.msra.mxu0 0.0
        %439 = vmatprep.mubr.f32.mxu0 0.0
        %440 = vmatmul.mubr.f32.gmra.mrb[0].mxu0 %v370
        %v441 = vpop.f32.mrb[0].mxu0
        %v442 = vadd.f32 0.0, %v441
        %v443 = vpop.f32.mrb[0].mxu0
        %v444 = vadd.f32 0.0, %v443
        %445 = vmatprep.mubr.f32.mxu0 0.0
        %446 = vmatmul.mubr.f32.gmra.mrb[0].mxu0 %v373
        %v447 = vpop.f32.mrb[0].mxu0
        %v448 = vadd.f32 0.0, %v447
        %v449 = vpop.f32.mrb[0].mxu0
        %v450 = vadd.f32 0.0, %v449
        %451 = vmatprep.mubr.f32.mxu0 0.0
        %452 = vmatmul.mubr.f32.gmra.mrb[0].mxu0 %v370
        %v453 = vpop.f32.mrb[0].mxu0
        %v454 = vpop.f32.mrb[0].mxu0
        %v455 = vadd.f32 0.0, %v454
        %456 = vmatprep.mubr.f32.mxu0 0.0
        %457 = vmatmul.mubr.f32.gmra.mrb[0].mxu0 %v373
        %v458 = vpop.f32.mrb[0].mxu0
        %v459 = vpop.f32.mrb[0].mxu0
        %v460 = vadd.f32 0.0, %v459
        %461 = vmatprep.mubr.f32.mxu0 0.0
        %462 = vmatmul.mubr.f32.gmra.mrb[0].mxu0 %v370
        %v463 = vpop.f32.mrb[0].mxu0
        %v464 = vpop.f32.mrb[0].mxu0
        %v465 = vadd.f32 0.0, %v464
        %466 = vmatprep.mubr.f32.mxu0 0.0
        %467 = vmatmul.mubr.f32.gmra.mrb[0].mxu0 %v373
        %v468 = vpop.f32.mrb[0].mxu0
        %v469 = vpop.f32.mrb[0].mxu0
        %v470 = vadd.f32 0.0, %v469
        %471 = vmatprep.mubr.f32.mxu0 0.0
        %472 = vmatmul.mubr.f32.gmra.mrb[0].mxu0 %v370
        %v473 = vpop.f32.mrb[0].mxu0
        %v474 = vpop.f32.mrb[0].mxu0
        %v475 = vadd.f32 0.0, %v474
        %476 = vmatprep.mubr.f32.mxu0 0.0
        %477 = vmatmul.mubr.f32.gmra.mrb[0].mxu0 %v373
        %v478 = vpop.f32.mrb[0].mxu0
        %v479 = vpop.f32.mrb[0].mxu0
        %v480 = vadd.f32 0.0, %v479
        %481 = vdwg.mxu0
        %482 = vmatprep.subr.mxu0 0.0
        %483 = vmatpush1.msra.mxu0 %v359
        %484 = vmatprep.subr.mxu0 0.0
        %485 = vmatpush1.msra.mxu0 %v362
        %486 = vmatprep.subr.mxu0 0.0
        %487 = vmatpush1.msra.mxu0 %v365
        %488 = vmatprep.subr.mxu0 0.0
        %489 = vmatpush1.msra.mxu0 %v368
        %490 = vmatprep.subr.mxu0 0.0
        %491 = vmatpush1.msra.mxu0 0.0
        %492 = vmatprep.subr.mxu0 0.0
        %493 = vmatpush1.msra.mxu0 0.0
        %494 = vmatprep.subr.mxu0 0.0
        %495 = vmatpush1.msra.mxu0 0.0
        %496 = vmatprep.subr.mxu0 0.0
        %497 = vmatpush1.msra.mxu0 0.0
        %498 = vmatprep.subr.mxu0 0.0
        %499 = vmatpush1.msra.mxu0 0.0
        %500 = vmatprep.subr.mxu0 0.0
        %501 = vmatpush1.msra.mxu0 0.0
        %502 = vmatprep.subr.mxu0 0.0
        %503 = vmatpush1.msra.mxu0 0.0
        %504 = vmatprep.subr.mxu0 0.0
        %505 = vmatpush1.msra.mxu0 0.0
        %506 = vmatprep.subr.mxu0 0.0
        %507 = vmatpush1.msra.mxu0 0.0
        %508 = vmatprep.subr.mxu0 0.0
        %509 = vmatpush1.msra.mxu0 0.0
        %510 = vmatprep.subr.mxu0 0.0
        %511 = vmatpush1.msra.mxu0 0.0
        %512 = vmatprep.subr.mxu0 0.0
        %513 = vmatpush1.msra.mxu0 0.0
        %514 = vmatprep.subr.mxu0 0.0
        %515 = vmatpush1.msra.mxu0 0.0
        %516 = vmatprep.subr.mxu0 0.0
        %517 = vmatpush1.msra.mxu0 0.0
        %518 = vmatprep.subr.mxu0 0.0
        %519 = vmatpush1.msra.mxu0 0.0
        %520 = vmatprep.subr.mxu0 0.0
        %521 = vmatpush1.msra.mxu0 0.0
        %522 = vmatprep.subr.mxu0 0.0
        %523 = vmatpush1.msra.mxu0 0.0
        %524 = vmatprep.subr.mxu0 0.0
        %525 = vmatpush1.msra.mxu0 0.0
        %526 = vmatprep.subr.mxu0 0.0
        %527 = vmatpush1.msra.mxu0 0.0
        %528 = vmatprep.subr.mxu0 0.0
        %529 = vmatpush1.msra.mxu0 0.0
        %530 = vmatprep.subr.mxu0 0.0
        %531 = vmatpush1.msra.mxu0 0.0
        %532 = vmatprep.subr.mxu0 0.0
        %533 = vmatpush1.msra.mxu0 0.0
        %534 = vmatprep.subr.mxu0 0.0
        %535 = vmatpush1.msra.mxu0 0.0
        %536 = vmatprep.subr.mxu0 0.0
        %537 = vmatpush1.msra.mxu0 0.0
        %538 = vmatprep.subr.mxu0 0.0
        %539 = vmatpush1.msra.mxu0 0.0
        %540 = vmatprep.subr.mxu0 0.0
        %541 = vmatpush1.msra.mxu0 0.0
        %542 = vmatprep.subr.mxu0 0.0
        %543 = vmatpush1.msra.mxu0 0.0
        %544 = vmatprep.subr.mxu0 0.0
        %545 = vmatpush1.msra.mxu0 0.0
        %546 = vmatprep.mubr.f32.mxu0 0.0
        %547 = vmatmul.mubr.f32.gmra.mrb[0].mxu0 %v370
        %v548 = vpop.f32.mrb[0].mxu0
        %v549 = vadd.f32 0.0, %v548
        %v550 = vpop.f32.mrb[0].mxu0
        %551 = vmatprep.mubr.f32.mxu0 0.0
        %552 = vmatmul.mubr.f32.gmra.mrb[0].mxu0 %v373
        %v553 = vpop.f32.mrb[0].mxu0
        %v554 = vadd.f32 0.0, %v553
        %v555 = vpop.f32.mrb[0].mxu0
        %556 = vmatprep.mubr.f32.mxu0 0.0
        %557 = vmatmul.mubr.f32.gmra.mrb[0].mxu0 %v370
        %v558 = vpop.f32.mrb[0].mxu0
        %v559 = vadd.f32 0.0, %v558
        %v560 = vpop.f32.mrb[0].mxu0
        %561 = vmatprep.mubr.f32.mxu0 0.0
        %562 = vmatmul.mubr.f32.gmra.mrb[0].mxu0 %v373
        %v563 = vpop.f32.mrb[0].mxu0
        %v564 = vadd.f32 0.0, %v563
        %v565 = vpop.f32.mrb[0].mxu0
        %566 = vmatprep.mubr.f32.mxu0 0.0
        %567 = vmatmul.mubr.f32.gmra.mrb[0].mxu0 %v370
        %v568 = vpop.f32.mrb[0].mxu0
        %v569 = vadd.f32 0.0, %v568
        %v570 = vpop.f32.mrb[0].mxu0
        %571 = vmatprep.mubr.f32.mxu0 0.0
        %572 = vmatmul.mubr.f32.gmra.mrb[0].mxu0 %v373
        %v573 = vpop.f32.mrb[0].mxu0
        %v574 = vadd.f32 0.0, %v573
        %v575 = vpop.f32.mrb[0].mxu0
        %576 = vmatprep.mubr.f32.mxu0 0.0
        %577 = vmatmul.mubr.f32.gmra.mrb[0].mxu0 %v370
        %v578 = vpop.f32.mrb[0].mxu0
        %v579 = vadd.f32 0.0, %v578
        %v580 = vpop.f32.mrb[0].mxu0
        %581 = vmatprep.mubr.f32.mxu0 0.0
        %582 = vmatmul.mubr.f32.gmra.mrb[0].mxu0 %v373
        %v583 = vpop.f32.mrb[0].mxu0
        %v584 = vadd.f32 0.0, %v583
        %v585 = vpop.f32.mrb[0].mxu0
        %586 = vdwg.mxu0
        %v587 = vmul.f32 %v322, %v444
        %v588 = vmul.f32 %v327, %v450
        %v589 = vadd.f32 %v587, 0.54132485
        %v590 = vadd.f32 %v588, 0.54132485
        %v591 = vmax.f32 %v589, 0.0
        %v592 = vmax.f32 %v590, 0.0
        %vm593 = vcmp.ne.f32.partialorder %v589, %v589
        %vm594 = vcmp.ne.f32.partialorder %v590, %v590
        %v595 = vadd.f32 %v589, 0.0
        %v596 = vadd.f32 %v590, 0.0
        %v597 = vand.u32 2147483647, %v589
        %v598 = vand.u32 2147483647, %v590
        %v599 = vsub.f32 0.0, %v597
        %v600 = vsub.f32 0.0, %v598
        %v601 = vmul.f32 %v599, 1.442695
        %v602 = vpow.pop %v601
        %v603 = vmul.f32 %v600, 1.442695
        %v604 = vpow.pop %v603
        %v605 = vadd.f32 %v602, 1.0
        %v606 = vlog2.pop %v605
        %v607 = vmul.f32 %v606, 0.6931472
        %v608 = vmul.f32 -0.5, %v602
        %v609 = vadd.f32 %v608, 1.0
        %v610 = vmul.f32 %v609, %v602
        %v611 = vand.u32 2147483647, %v602
        %vm612 = vcmp.lt.f32.partialorder %v611, 0.0004427343
        %v613 = vsel %vm612, %v610, %v607
        %v614 = vadd.f32 %v604, 1.0
        %v615 = vlog2.pop %v614
        %v616 = vmul.f32 %v615, 0.6931472
        %v617 = vmul.f32 -0.5, %v604
        %v618 = vadd.f32 %v617, 1.0
        %v619 = vmul.f32 %v618, %v604
        %v620 = vand.u32 2147483647, %v604
        %vm621 = vcmp.lt.f32.partialorder %v620, 0.0004427343
        %v622 = vsel %vm621, %v619, %v616
        %v623 = vadd.f32 %v591, %v613
        %v624 = vadd.f32 %v592, %v622
        %v625 = vsel %vm593, %v595, %v623
        %v626 = vsel %vm594, %v596, %v624
        %v627 = vld [vmem:[%s252] sm:$0xff]
        %v628 = vld [vmem:[%s252 + $0x8] sm:$0xff]
        %v629 = vmul.f32 %v627, %v322
        %v630 = vmul.f32 %v628, %v327
        %633 = vrot.lane.b32.xlu0 %v629, 112
        %v634 = vpop.permute.xlu0 %633
        %635 = vrot.lane.b32.xlu0 %v630, 112
        %v636 = vpop.permute.xlu0 %635
        %v639 = vmul.f32 %v625, %v634
        %v640 = vmul.f32 %v626, %v636
        %643 = vrot.lane.b32.xlu0 %v639, 112
        %v644 = vpop.permute.xlu0 %643
        %645 = vrot.lane.b32.xlu0 %v640, 112
        %v646 = vpop.permute.xlu0 %645
        %v649 = vadd.f32 %v587, %v644
        %v650 = vadd.f32 %v588, %v646
        %v651 = vld [vmem:[%s1] sm:$0xff]
        %v652 = vld [vmem:[%s1 + $0x10] sm:$0xff]
        %v653 = vld [vmem:[%s1 + $0x20] sm:$0xff]
        %v654 = vld [vmem:[%s1 + $0x30] sm:$0xff]
        %v655 = vld [vmem:[%s1 + $0x40] sm:$0xff]
        %v656 = vld [vmem:[%s1 + $0x50] sm:$0xff]
        %v657 = vld [vmem:[%s1 + $0x60] sm:$0xff]
        %v658 = vld [vmem:[%s1 + $0x70] sm:$0xff]
        %667 = vrot.lane.b32.xlu0 %v651, 64
        %v668 = vpop.permute.xlu0 %667
        %669 = vrot.lane.b32.xlu0 %v652, 64
        %v670 = vpop.permute.xlu0 %669
        %671 = vrot.lane.b32.xlu0 %v653, 64
        %v672 = vpop.permute.xlu0 %671
        %673 = vrot.lane.b32.xlu0 %v654, 64
        %v674 = vpop.permute.xlu0 %673
        %675 = vrot.lane.b32.xlu0 %v655, 64
        %v676 = vpop.permute.xlu0 %675
        %677 = vrot.lane.b32.xlu0 %v656, 64
        %v678 = vpop.permute.xlu0 %677
        %679 = vrot.lane.b32.xlu0 %v657, 64
        %v680 = vpop.permute.xlu0 %679
        %681 = vrot.lane.b32.xlu0 %v658, 64
        %v682 = vpop.permute.xlu0 %681
        %v691 = vmul.f32 %v444, %v668
        %v692 = vmul.f32 %v450, %v670
        %v693 = vmul.f32 %v455, %v672
        %v694 = vmul.f32 %v460, %v674
        %v695 = vmul.f32 %v465, %v676
        %v696 = vmul.f32 %v470, %v678
        %v697 = vmul.f32 %v475, %v680
        %v698 = vmul.f32 %v480, %v682
        %699 = vrot.lane.b32.xlu0 %v651, 32
        %v700 = vpop.permute.xlu0 %699
        %701 = vrot.lane.b32.xlu0 %v652, 32
        %v702 = vpop.permute.xlu0 %701
        %703 = vrot.lane.b32.xlu0 %v653, 32
        %v704 = vpop.permute.xlu0 %703
        %705 = vrot.lane.b32.xlu0 %v654, 32
        %v706 = vpop.permute.xlu0 %705
        %707 = vrot.lane.b32.xlu0 %v655, 32
        %v708 = vpop.permute.xlu0 %707
        %709 = vrot.lane.b32.xlu0 %v656, 32
        %v710 = vpop.permute.xlu0 %709
        %711 = vrot.lane.b32.xlu0 %v657, 32
        %v712 = vpop.permute.xlu0 %711
        %713 = vrot.lane.b32.xlu0 %v658, 32
        %v714 = vpop.permute.xlu0 %713
        %v723 = vmul.f32 %v549, %v700
        %v724 = vmul.f32 %v554, %v702
        %v725 = vmul.f32 %v559, %v704
        %v726 = vmul.f32 %v564, %v706
        %v727 = vmul.f32 %v569, %v708
        %v728 = vmul.f32 %v574, %v710
        %v729 = vmul.f32 %v579, %v712
        %v730 = vmul.f32 %v584, %v714
        %v731 = vadd.f32 %v691, %v723
        %v732 = vadd.f32 %v692, %v724
        %v733 = vadd.f32 %v693, %v725
        %v734 = vadd.f32 %v694, %v726
        %v735 = vadd.f32 %v695, %v727
        %v736 = vadd.f32 %v696, %v728
        %v737 = vadd.f32 %v697, %v729
        %v738 = vadd.f32 %v698, %v730
        %v739 = vld [vmem:[%s1 + $0x8] sm:$0xff]
        %v740 = vld [vmem:[%s1 + $0x18] sm:$0xff]
        %v741 = vld [vmem:[%s1 + $0x28] sm:$0xff]
        %v742 = vld [vmem:[%s1 + $0x38] sm:$0xff]
        %v743 = vld [vmem:[%s1 + $0x48] sm:$0xff]
        %v744 = vld [vmem:[%s1 + $0x58] sm:$0xff]
        %v745 = vld [vmem:[%s1 + $0x68] sm:$0xff]
        %v746 = vld [vmem:[%s1 + $0x78] sm:$0xff]
        %755 = vrot.lane.b32.xlu0 %v739, 32
        %v756 = vpop.permute.xlu0 %755
        %757 = vrot.lane.b32.xlu0 %v740, 32
        %v758 = vpop.permute.xlu0 %757
        %759 = vrot.lane.b32.xlu0 %v741, 32
        %v760 = vpop.permute.xlu0 %759
        %761 = vrot.lane.b32.xlu0 %v742, 32
        %v762 = vpop.permute.xlu0 %761
        %763 = vrot.lane.b32.xlu0 %v743, 32
        %v764 = vpop.permute.xlu0 %763
        %765 = vrot.lane.b32.xlu0 %v744, 32
        %v766 = vpop.permute.xlu0 %765
        %767 = vrot.lane.b32.xlu0 %v745, 32
        %v768 = vpop.permute.xlu0 %767
        %769 = vrot.lane.b32.xlu0 %v746, 32
        %v770 = vpop.permute.xlu0 %769
        %v779 = vmul.f32 %v444, %v756
        %v780 = vmul.f32 %v450, %v758
        %v781 = vmul.f32 %v455, %v760
        %v782 = vmul.f32 %v460, %v762
        %v783 = vmul.f32 %v465, %v764
        %v784 = vmul.f32 %v470, %v766
        %v785 = vmul.f32 %v475, %v768
        %v786 = vmul.f32 %v480, %v770
        %v787 = vmul.f32 %v549, %v739
        %v788 = vmul.f32 %v554, %v740
        %v789 = vmul.f32 %v559, %v741
        %v790 = vmul.f32 %v564, %v742
        %v791 = vmul.f32 %v569, %v743
        %v792 = vmul.f32 %v574, %v744
        %v793 = vmul.f32 %v579, %v745
        %v794 = vmul.f32 %v584, %v746
        %v795 = vadd.f32 %v779, %v787
        %v796 = vadd.f32 %v780, %v788
        %v797 = vadd.f32 %v781, %v789
        %v798 = vadd.f32 %v782, %v790
        %v799 = vadd.f32 %v783, %v791
        %v800 = vadd.f32 %v784, %v792
        %v801 = vadd.f32 %v785, %v793
        %v802 = vadd.f32 %v786, %v794
        %811 = vrot.lane.b32.xlu0 %v795, 96
        %v812 = vpop.permute.xlu0 %811
        %813 = vrot.lane.b32.xlu0 %v796, 96
        %v814 = vpop.permute.xlu0 %813
        %815 = vrot.lane.b32.xlu0 %v797, 96
        %v816 = vpop.permute.xlu0 %815
        %817 = vrot.lane.b32.xlu0 %v798, 96
        %v818 = vpop.permute.xlu0 %817
        %819 = vrot.lane.b32.xlu0 %v799, 96
        %v820 = vpop.permute.xlu0 %819
        %821 = vrot.lane.b32.xlu0 %v800, 96
        %v822 = vpop.permute.xlu0 %821
        %823 = vrot.lane.b32.xlu0 %v801, 96
        %v824 = vpop.permute.xlu0 %823
        %825 = vrot.lane.b32.xlu0 %v802, 96
        %v826 = vpop.permute.xlu0 %825
        %v828 = vsel %vm291, %v731, 0
        %v831 = vsel %vm291, %v732, 0
        %v834 = vsel %vm291, %v733, 0
        %v837 = vsel %vm291, %v734, 0
        %v840 = vsel %vm291, %v735, 0
        %v843 = vsel %vm291, %v736, 0
        %v846 = vsel %vm291, %v737, 0
        %v849 = vsel %vm291, %v738, 0
        %v851 = vsel %vm291, %v812, 0
        %v853 = vsel %vm291, %v814, 0
        %v855 = vsel %vm291, %v816, 0
        %v857 = vsel %vm291, %v818, 0
        %v859 = vsel %vm291, %v820, 0
        %v861 = vsel %vm291, %v822, 0
        %v863 = vsel %vm291, %v824, 0
        %v865 = vsel %vm291, %v826, 0
        %867 = vmatprep.subr.mxu0 0.0
        %868 = vmatpush1.xpose.msra.mxu0 %v851
        %869 = vmatprep.subr.mxu0 0.0
        %870 = vmatpush1.xpose.msra.mxu0 %v853
        %871 = vmatprep.subr.mxu0 0.0
        %872 = vmatpush1.xpose.msra.mxu0 %v855
        %873 = vmatprep.subr.mxu0 0.0
        %874 = vmatpush1.xpose.msra.mxu0 %v857
        %875 = vmatprep.subr.mxu0 0.0
        %876 = vmatpush1.xpose.msra.mxu0 %v859
        %877 = vmatprep.subr.mxu0 0.0
        %878 = vmatpush1.xpose.msra.mxu0 %v861
        %879 = vmatprep.subr.mxu0 0.0
        %880 = vmatpush1.xpose.msra.mxu0 %v863
        %881 = vmatprep.subr.mxu0 0.0
        %882 = vmatpush1.xpose.msra.mxu0 %v865
        %883 = vmatprep.subr.mxu0 0.0
        %884 = vmatpush1.xpose.msra.mxu0 0.0
        %885 = vmatprep.subr.mxu0 0.0
        %886 = vmatpush1.xpose.msra.mxu0 0.0
        %887 = vmatprep.subr.mxu0 0.0
        %888 = vmatpush1.xpose.msra.mxu0 0.0
        %889 = vmatprep.subr.mxu0 0.0
        %890 = vmatpush1.xpose.msra.mxu0 0.0
        %891 = vmatprep.subr.mxu0 0.0
        %892 = vmatpush1.xpose.msra.mxu0 0.0
        %893 = vmatprep.subr.mxu0 0.0
        %894 = vmatpush1.xpose.msra.mxu0 0.0
        %895 = vmatprep.subr.mxu0 0.0
        %896 = vmatpush1.xpose.msra.mxu0 0.0
        %897 = vmatprep.subr.mxu0 0.0
        %898 = vmatpush1.xpose.msra.mxu0 0.0
        %899 = vmatprep.subr.mxu0 0.0
        %900 = vmatpush1.xpose.msra.mxu0 0.0
        %901 = vmatprep.subr.mxu0 0.0
        %902 = vmatpush1.xpose.msra.mxu0 0.0
        %903 = vmatprep.subr.mxu0 0.0
        %904 = vmatpush1.xpose.msra.mxu0 0.0
        %905 = vmatprep.subr.mxu0 0.0
        %906 = vmatpush1.xpose.msra.mxu0 0.0
        %907 = vmatprep.subr.mxu0 0.0
        %908 = vmatpush1.xpose.msra.mxu0 0.0
        %909 = vmatprep.subr.mxu0 0.0
        %910 = vmatpush1.xpose.msra.mxu0 0.0
        %911 = vmatprep.subr.mxu0 0.0
        %912 = vmatpush1.xpose.msra.mxu0 0.0
        %913 = vmatprep.subr.mxu0 0.0
        %914 = vmatpush1.xpose.msra.mxu0 0.0
        %915 = vmatprep.subr.mxu0 0.0
        %916 = vmatpush1.xpose.msra.mxu0 0.0
        %917 = vmatprep.subr.mxu0 0.0
        %918 = vmatpush1.xpose.msra.mxu0 0.0
        %919 = vmatprep.subr.mxu0 0.0
        %920 = vmatpush1.xpose.msra.mxu0 0.0
        %921 = vmatprep.subr.mxu0 0.0
        %922 = vmatpush1.xpose.msra.mxu0 0.0
        %923 = vmatprep.subr.mxu0 0.0
        %924 = vmatpush1.xpose.msra.mxu0 0.0
        %925 = vmatprep.subr.mxu0 0.0
        %926 = vmatpush1.xpose.msra.mxu0 0.0
        %927 = vmatprep.subr.mxu0 0.0
        %928 = vmatpush1.xpose.msra.mxu0 0.0
        %929 = vmatprep.subr.mxu0 0.0
        %930 = vmatpush1.xpose.msra.mxu0 0.0
        %931 = vmatprep.mubr.f32.mxu0 0.0
        %932 = vmatmul.mubr.f32.gmra.mrb[0].mxu0 %v828
        %v933 = vpop.f32.mrb[0].mxu0
        %v934 = vadd.f32 %v651, %v933
        %v935 = vpop.f32.mrb[0].mxu0
        %936 = vmatprep.mubr.f32.mxu0 0.0
        %937 = vmatmul.mubr.f32.gmra.mrb[0].mxu0 %v831
        %v938 = vpop.f32.mrb[0].mxu0
        %v939 = vadd.f32 %v652, %v938
        %v940 = vpop.f32.mrb[0].mxu0
        %941 = vmatprep.mubr.f32.mxu0 0.0
        %942 = vmatmul.mubr.f32.gmra.mrb[0].mxu0 %v834
        %v943 = vpop.f32.mrb[0].mxu0
        %v944 = vadd.f32 %v653, %v943
        %v945 = vpop.f32.mrb[0].mxu0
        %946 = vmatprep.mubr.f32.mxu0 0.0
        %947 = vmatmul.mubr.f32.gmra.mrb[0].mxu0 %v837
        %v948 = vpop.f32.mrb[0].mxu0
        %v949 = vadd.f32 %v654, %v948
        %v950 = vpop.f32.mrb[0].mxu0
        %951 = vmatprep.mubr.f32.mxu0 0.0
        %952 = vmatmul.mubr.f32.gmra.mrb[0].mxu0 %v840
        %v953 = vpop.f32.mrb[0].mxu0
        %v954 = vadd.f32 %v655, %v953
        %v955 = vpop.f32.mrb[0].mxu0
        %956 = vmatprep.mubr.f32.mxu0 0.0
        %957 = vmatmul.mubr.f32.gmra.mrb[0].mxu0 %v843
        %v958 = vpop.f32.mrb[0].mxu0
        %v959 = vadd.f32 %v656, %v958
        %v960 = vpop.f32.mrb[0].mxu0
        %961 = vmatprep.mubr.f32.mxu0 0.0
        %962 = vmatmul.mubr.f32.gmra.mrb[0].mxu0 %v846
        %v963 = vpop.f32.mrb[0].mxu0
        %v964 = vadd.f32 %v657, %v963
        %v965 = vpop.f32.mrb[0].mxu0
        %966 = vmatprep.mubr.f32.mxu0 0.0
        %967 = vmatmul.mubr.f32.gmra.mrb[0].mxu0 %v849
        %v968 = vpop.f32.mrb[0].mxu0
        %v969 = vadd.f32 %v658, %v968
        %v970 = vpop.f32.mrb[0].mxu0
        %971 = vdwg.mxu0
        %vm972 = vcmask 523264
        %v973 = vsel %vm972, %v934, -inf
        %974 = vmax.xlane.f32.xlu0 %v973
        %v975 = vpop.xlane.xlu0 %974
        %v976 = vsel %vm972, %v939, -inf
        %977 = vmax.xlane.f32.xlu0 %v976
        %v978 = vpop.xlane.xlu0 %977
        %v979 = vsel %vm972, %v944, -inf
        %980 = vmax.xlane.f32.xlu0 %v979
        %v981 = vpop.xlane.xlu0 %980
        %v982 = vsel %vm972, %v949, -inf
        %983 = vmax.xlane.f32.xlu0 %v982
        %v984 = vpop.xlane.xlu0 %983
        %v985 = vsel %vm972, %v954, -inf
        %986 = vmax.xlane.f32.xlu0 %v985
        %v987 = vpop.xlane.xlu0 %986
        %v988 = vsel %vm972, %v959, -inf
        %989 = vmax.xlane.f32.xlu0 %v988
        %v990 = vpop.xlane.xlu0 %989
        %v991 = vsel %vm972, %v964, -inf
        %992 = vmax.xlane.f32.xlu0 %v991
        %v993 = vpop.xlane.xlu0 %992
        %v994 = vsel %vm972, %v969, -inf
        %995 = vmax.xlane.f32.xlu0 %v994
        %v996 = vpop.xlane.xlu0 %995
        %v997 = vsub.f32 %v934, %v975
        %v998 = vsub.f32 %v939, %v978
        %v999 = vsub.f32 %v944, %v981
        %v1000 = vsub.f32 %v949, %v984
        %v1001 = vsub.f32 %v954, %v987
        %v1002 = vsub.f32 %v959, %v990
        %v1003 = vsub.f32 %v964, %v993
        %v1004 = vsub.f32 %v969, %v996
        %v1005 = vmul.f32 %v997, 1.442695
        %v1006 = vpow.pop %v1005
        %v1007 = vmul.f32 %v998, 1.442695
        %v1008 = vpow.pop %v1007
        %v1009 = vmul.f32 %v999, 1.442695
        %v1010 = vpow.pop %v1009
        %v1011 = vmul.f32 %v1000, 1.442695
        %v1012 = vpow.pop %v1011
        %v1013 = vmul.f32 %v1001, 1.442695
        %v1014 = vpow.pop %v1013
        %v1015 = vmul.f32 %v1002, 1.442695
        %v1016 = vpow.pop %v1015
        %v1017 = vmul.f32 %v1003, 1.442695
        %v1018 = vpow.pop %v1017
        %v1019 = vmul.f32 %v1004, 1.442695
        %v1020 = vpow.pop %v1019
        %v1021 = vsel %vm972, %v1006, 0.0
        %1022 = vadd.xlane.f32.xlu0 %v1021
        %v1023 = vpop.xlane.xlu0 %1022
        %v1024 = vsel %vm972, %v1008, 0.0
        %1025 = vadd.xlane.f32.xlu0 %v1024
        %v1026 = vpop.xlane.xlu0 %1025
        %v1027 = vsel %vm972, %v1010, 0.0
        %1028 = vadd.xlane.f32.xlu0 %v1027
        %v1029 = vpop.xlane.xlu0 %1028
        %v1030 = vsel %vm972, %v1012, 0.0
        %1031 = vadd.xlane.f32.xlu0 %v1030
        %v1032 = vpop.xlane.xlu0 %1031
        %v1033 = vsel %vm972, %v1014, 0.0
        %1034 = vadd.xlane.f32.xlu0 %v1033
        %v1035 = vpop.xlane.xlu0 %1034
        %v1036 = vsel %vm972, %v1016, 0.0
        %1037 = vadd.xlane.f32.xlu0 %v1036
        %v1038 = vpop.xlane.xlu0 %1037
        %v1039 = vsel %vm972, %v1018, 0.0
        %1040 = vadd.xlane.f32.xlu0 %v1039
        %v1041 = vpop.xlane.xlu0 %1040
        %v1042 = vsel %vm972, %v1020, 0.0
        %1043 = vadd.xlane.f32.xlu0 %v1042
        %v1044 = vpop.xlane.xlu0 %1043
        %v1045 = vrcp.pop %v1023
        %v1046 = vrcp.pop %v1026
        %v1047 = vrcp.pop %v1029
        %v1048 = vrcp.pop %v1032
        %v1049 = vrcp.pop %v1035
        %v1050 = vrcp.pop %v1038
        %v1051 = vrcp.pop %v1041
        %v1052 = vrcp.pop %v1044
        %v1053 = vmul.f32 %v1006, %v1045
        %v1054 = vmul.f32 %v1008, %v1046
        %v1055 = vmul.f32 %v1010, %v1047
        %v1056 = vmul.f32 %v1012, %v1048
        %v1057 = vmul.f32 %v1014, %v1049
        %v1058 = vmul.f32 %v1016, %v1050
        %v1059 = vmul.f32 %v1018, %v1051
        %v1060 = vmul.f32 %v1020, %v1052
        %1069 = vrot.lane.b32.xlu0 %v444, 64
        %v1070 = vpop.permute.xlu0 %1069
        %1071 = vrot.lane.b32.xlu0 %v450, 64
        %v1072 = vpop.permute.xlu0 %1071
        %1073 = vrot.lane.b32.xlu0 %v455, 64
        %v1074 = vpop.permute.xlu0 %1073
        %1075 = vrot.lane.b32.xlu0 %v460, 64
        %v1076 = vpop.permute.xlu0 %1075
        %1077 = vrot.lane.b32.xlu0 %v465, 64
        %v1078 = vpop.permute.xlu0 %1077
        %1079 = vrot.lane.b32.xlu0 %v470, 64
        %v1080 = vpop.permute.xlu0 %1079
        %1081 = vrot.lane.b32.xlu0 %v475, 64
        %v1082 = vpop.permute.xlu0 %1081
        %1083 = vrot.lane.b32.xlu0 %v480, 64
        %v1084 = vpop.permute.xlu0 %1083
        %v1094 = vsel %vm972, %v1053, 0
        %v1097 = vsel %vm972, %v1054, 0
        %v1100 = vsel %vm972, %v1055, 0
        %v1103 = vsel %vm972, %v1056, 0
        %v1106 = vsel %vm972, %v1057, 0
        %v1109 = vsel %vm972, %v1058, 0
        %v1112 = vsel %vm972, %v1059, 0
        %v1115 = vsel %vm972, %v1060, 0
        %1117 = vmatprep.subr.mxu0 0.0
        %1118 = vmatpush1.msra.mxu0 %v1070
        %1119 = vmatprep.subr.mxu0 0.0
        %1120 = vmatpush1.msra.mxu0 %v1072
        %1121 = vmatprep.subr.mxu0 0.0
        %1122 = vmatpush1.msra.mxu0 %v1074
        %1123 = vmatprep.subr.mxu0 0.0
        %1124 = vmatpush1.msra.mxu0 %v1076
        %1125 = vmatprep.subr.mxu0 0.0
        %1126 = vmatpush1.msra.mxu0 %v1078
        %1127 = vmatprep.subr.mxu0 0.0
        %1128 = vmatpush1.msra.mxu0 %v1080
        %1129 = vmatprep.subr.mxu0 0.0
        %1130 = vmatpush1.msra.mxu0 %v1082
        %1131 = vmatprep.subr.mxu0 0.0
        %1132 = vmatpush1.msra.mxu0 %v1084
        %1133 = vmatprep.subr.mxu0 0.0
        %1134 = vmatpush1.msra.mxu0 0.0
        %1135 = vmatprep.subr.mxu0 0.0
        %1136 = vmatpush1.msra.mxu0 0.0
        %1137 = vmatprep.subr.mxu0 0.0
        %1138 = vmatpush1.msra.mxu0 0.0
        %1139 = vmatprep.subr.mxu0 0.0
        %1140 = vmatpush1.msra.mxu0 0.0
        %1141 = vmatprep.subr.mxu0 0.0
        %1142 = vmatpush1.msra.mxu0 0.0
        %1143 = vmatprep.subr.mxu0 0.0
        %1144 = vmatpush1.msra.mxu0 0.0
        %1145 = vmatprep.subr.mxu0 0.0
        %1146 = vmatpush1.msra.mxu0 0.0
        %1147 = vmatprep.subr.mxu0 0.0
        %1148 = vmatpush1.msra.mxu0 0.0
        %1149 = vmatprep.subr.mxu0 0.0
        %1150 = vmatpush1.msra.mxu0 0.0
        %1151 = vmatprep.subr.mxu0 0.0
        %1152 = vmatpush1.msra.mxu0 0.0
        %1153 = vmatprep.subr.mxu0 0.0
        %1154 = vmatpush1.msra.mxu0 0.0
        %1155 = vmatprep.subr.mxu0 0.0
        %1156 = vmatpush1.msra.mxu0 0.0
        %1157 = vmatprep.subr.mxu0 0.0
        %1158 = vmatpush1.msra.mxu0 0.0
        %1159 = vmatprep.subr.mxu0 0.0
        %1160 = vmatpush1.msra.mxu0 0.0
        %1161 = vmatprep.subr.mxu0 0.0
        %1162 = vmatpush1.msra.mxu0 0.0
        %1163 = vmatprep.subr.mxu0 0.0
        %1164 = vmatpush1.msra.mxu0 0.0
        %1165 = vmatprep.subr.mxu0 0.0
        %1166 = vmatpush1.msra.mxu0 0.0
        %1167 = vmatprep.subr.mxu0 0.0
        %1168 = vmatpush1.msra.mxu0 0.0
        %1169 = vmatprep.subr.mxu0 0.0
        %1170 = vmatpush1.msra.mxu0 0.0
        %1171 = vmatprep.subr.mxu0 0.0
        %1172 = vmatpush1.msra.mxu0 0.0
        %1173 = vmatprep.subr.mxu0 0.0
        %1174 = vmatpush1.msra.mxu0 0.0
        %1175 = vmatprep.subr.mxu0 0.0
        %1176 = vmatpush1.msra.mxu0 0.0
        %1177 = vmatprep.subr.mxu0 0.0
        %1178 = vmatpush1.msra.mxu0 0.0
        %1179 = vmatprep.subr.mxu0 0.0
        %1180 = vmatpush1.msra.mxu0 0.0
        %1181 = vmatprep.mubr.f32.mxu0 0.0
        %1182 = vmatmul.mubr.f32.gmra.mrb[0].mxu0 %v1094
        %v1183 = vpop.f32.mrb[0].mxu0
        %v1184 = vadd.f32 0.0, %v1183
        %v1185 = vpop.f32.mrb[0].mxu0
        %1186 = vmatprep.mubr.f32.mxu0 0.0
        %1187 = vmatmul.mubr.f32.gmra.mrb[0].mxu0 %v1097
        %v1188 = vpop.f32.mrb[0].mxu0
        %v1189 = vadd.f32 0.0, %v1188
        %v1190 = vpop.f32.mrb[0].mxu0
        %1191 = vmatprep.mubr.f32.mxu0 0.0
        %1192 = vmatmul.mubr.f32.gmra.mrb[0].mxu0 %v1100
        %v1193 = vpop.f32.mrb[0].mxu0
        %v1194 = vadd.f32 0.0, %v1193
        %v1195 = vpop.f32.mrb[0].mxu0
        %1196 = vmatprep.mubr.f32.mxu0 0.0
        %1197 = vmatmul.mubr.f32.gmra.mrb[0].mxu0 %v1103
        %v1198 = vpop.f32.mrb[0].mxu0
        %v1199 = vadd.f32 0.0, %v1198
        %v1200 = vpop.f32.mrb[0].mxu0
        %1201 = vmatprep.mubr.f32.mxu0 0.0
        %1202 = vmatmul.mubr.f32.gmra.mrb[0].mxu0 %v1106
        %v1203 = vpop.f32.mrb[0].mxu0
        %v1204 = vadd.f32 0.0, %v1203
        %v1205 = vpop.f32.mrb[0].mxu0
        %1206 = vmatprep.mubr.f32.mxu0 0.0
        %1207 = vmatmul.mubr.f32.gmra.mrb[0].mxu0 %v1109
        %v1208 = vpop.f32.mrb[0].mxu0
        %v1209 = vadd.f32 0.0, %v1208
        %v1210 = vpop.f32.mrb[0].mxu0
        %1211 = vmatprep.mubr.f32.mxu0 0.0
        %1212 = vmatmul.mubr.f32.gmra.mrb[0].mxu0 %v1112
        %v1213 = vpop.f32.mrb[0].mxu0
        %v1214 = vadd.f32 0.0, %v1213
        %v1215 = vpop.f32.mrb[0].mxu0
        %1216 = vmatprep.mubr.f32.mxu0 0.0
        %1217 = vmatmul.mubr.f32.gmra.mrb[0].mxu0 %v1115
        %v1218 = vpop.f32.mrb[0].mxu0
        %v1219 = vadd.f32 0.0, %v1218
        %v1220 = vpop.f32.mrb[0].mxu0
        %1221 = vdwg.mxu0
        %1222 = vrot.lane.b32.xlu0 %v739, 64
        %v1223 = vpop.permute.xlu0 %1222
        %1224 = vrot.lane.b32.xlu0 %v740, 64
        %v1225 = vpop.permute.xlu0 %1224
        %1226 = vrot.lane.b32.xlu0 %v741, 64
        %v1227 = vpop.permute.xlu0 %1226
        %1228 = vrot.lane.b32.xlu0 %v742, 64
        %v1229 = vpop.permute.xlu0 %1228
        %1230 = vrot.lane.b32.xlu0 %v743, 64
        %v1231 = vpop.permute.xlu0 %1230
        %1232 = vrot.lane.b32.xlu0 %v744, 64
        %v1233 = vpop.permute.xlu0 %1232
        %1234 = vrot.lane.b32.xlu0 %v745, 64
        %v1235 = vpop.permute.xlu0 %1234
        %1236 = vrot.lane.b32.xlu0 %v746, 64
        %v1237 = vpop.permute.xlu0 %1236
        %v1246 = vmul.f32 %v1184, %v1223
        %v1247 = vmul.f32 %v1189, %v1225
        %v1248 = vmul.f32 %v1194, %v1227
        %v1249 = vmul.f32 %v1199, %v1229
        %v1250 = vmul.f32 %v1204, %v1231
        %v1251 = vmul.f32 %v1209, %v1233
        %v1252 = vmul.f32 %v1214, %v1235
        %v1253 = vmul.f32 %v1219, %v1237
        %v1254 = vadd.f32 %v1246, %v1248
        %v1255 = vadd.f32 %v1247, %v1249
        %v1256 = vadd.f32 %v1250, %v1252
        %v1257 = vadd.f32 %v1251, %v1253
        %v1258 = vadd.f32 %v1254, %v1256
        %v1259 = vadd.f32 %v1255, %v1257
        %v1260 = vxor.u32 %v442, 2147483648
        %v1261 = vxor.u32 %v448, 2147483648
        %v1262 = vmul.f32 %v1260, 1.442695
        %v1263 = vpow.pop %v1262
        %v1264 = vmul.f32 %v1261, 1.442695
        %v1265 = vpow.pop %v1264
        %v1266 = vadd.f32 %v1263, 1.0
        %v1267 = vadd.f32 %v1265, 1.0
        %v1268 = vrcp.pop %v1266
        %v1269 = vmul.f32 1.0, %v1268
        %v1270 = vrcp.pop %v1267
        %v1271 = vmul.f32 1.0, %v1270
        %v1272 = vmul.f32 %v442, %v1269
        %v1273 = vmul.f32 %v448, %v1271
        %1276 = vrot.lane.b32.xlu0 %v442, 64
        %v1277 = vpop.permute.xlu0 %1276
        %1278 = vrot.lane.b32.xlu0 %v448, 64
        %v1279 = vpop.permute.xlu0 %1278
        %v1282 = vmul.f32 %v1272, %v1277
        %v1283 = vmul.f32 %v1273, %v1279
        %1286 = vrot.lane.b32.xlu0 %v649, 32
        %v1287 = vpop.permute.xlu0 %1286
        %1288 = vrot.lane.b32.xlu0 %v650, 32
        %v1289 = vpop.permute.xlu0 %1288
        %1294 = vrot.lane.b32.xlu0 %v1258, 16
        %v1295 = vpop.permute.xlu0 %1294
        %1296 = vrot.lane.b32.xlu0 %v1259, 16
        %v1297 = vpop.permute.xlu0 %1296
        %1302 = vrot.lane.b32.xlu0 %v1282, 48
        %v1303 = vpop.permute.xlu0 %1302
        %1304 = vrot.lane.b32.xlu0 %v1283, 48
        %v1305 = vpop.permute.xlu0 %1304
        %vm1308 = vcmask 130048
        %v1309 = vsel %vm1308, %v1287, %v1295
        %v1310 = vsel %vm1308, %v1289, %v1297
        %vm1311 = vcmask 392192
        %v1312 = vsel %vm1311, %v1309, %v1303
        %v1313 = vsel %vm1311, %v1310, %v1305
        %vm1314 = vcmask 916480
        %v1316 = vsel %vm1314, %v1312, 0
        %v1319 = vsel %vm1314, %v1313, 0
        %1321 = vmatprep.subr.mxu0 0.0
        %1322 = vmatpush1.msra.mxu0 %v276
        %1323 = vmatprep.subr.mxu0 0.0
        %1324 = vmatpush1.msra.mxu0 %v277
        %1325 = vmatprep.subr.mxu0 0.0
        %1326 = vmatpush1.msra.mxu0 %v278
        %1327 = vmatprep.subr.mxu0 0.0
        %1328 = vmatpush1.msra.mxu0 %v279
        %1329 = vmatprep.subr.mxu0 0.0
        %1330 = vmatpush1.msra.mxu0 %v280
        %1331 = vmatprep.subr.mxu0 0.0
        %1332 = vmatpush1.msra.mxu0 %v281
        %1333 = vmatprep.subr.mxu0 0.0
        %1334 = vmatpush1.msra.mxu0 %v282
        %1335 = vmatprep.subr.mxu0 0.0
        %1336 = vmatpush1.msra.mxu0 %v283
        %1337 = vmatprep.subr.mxu0 0.0
        %1338 = vmatpush1.msra.mxu0 %v284
        %1339 = vmatprep.subr.mxu0 0.0
        %1340 = vmatpush1.msra.mxu0 %v285
        %1341 = vmatprep.subr.mxu0 0.0
        %1342 = vmatpush1.msra.mxu0 %v286
        %1343 = vmatprep.subr.mxu0 0.0
        %1344 = vmatpush1.msra.mxu0 %v287
        %1345 = vmatprep.subr.mxu0 0.0
        %1346 = vmatpush1.msra.mxu0 %v288
        %1347 = vmatprep.subr.mxu0 0.0
        %1348 = vmatpush1.msra.mxu0 %v289
        %1349 = vmatprep.subr.mxu0 0.0
        %1350 = vmatpush1.msra.mxu0 0.0
        %1351 = vmatprep.subr.mxu0 0.0
        %1352 = vmatpush1.msra.mxu0 0.0
        %1353 = vmatprep.subr.mxu0 0.0
        %1354 = vmatpush1.msra.mxu0 0.0
        %1355 = vmatprep.subr.mxu0 0.0
        %1356 = vmatpush1.msra.mxu0 0.0
        %1357 = vmatprep.subr.mxu0 0.0
        %1358 = vmatpush1.msra.mxu0 0.0
        %1359 = vmatprep.subr.mxu0 0.0
        %1360 = vmatpush1.msra.mxu0 0.0
        %1361 = vmatprep.subr.mxu0 0.0
        %1362 = vmatpush1.msra.mxu0 0.0
        %1363 = vmatprep.subr.mxu0 0.0
        %1364 = vmatpush1.msra.mxu0 0.0
        %1365 = vmatprep.subr.mxu0 0.0
        %1366 = vmatpush1.msra.mxu0 0.0
        %1367 = vmatprep.subr.mxu0 0.0
        %1368 = vmatpush1.msra.mxu0 0.0
        %1369 = vmatprep.subr.mxu0 0.0
        %1370 = vmatpush1.msra.mxu0 0.0
        %1371 = vmatprep.subr.mxu0 0.0
        %1372 = vmatpush1.msra.mxu0 0.0
        %1373 = vmatprep.subr.mxu0 0.0
        %1374 = vmatpush1.msra.mxu0 0.0
        %1375 = vmatprep.subr.mxu0 0.0
        %1376 = vmatpush1.msra.mxu0 0.0
        %1377 = vmatprep.subr.mxu0 0.0
        %1378 = vmatpush1.msra.mxu0 0.0
        %1379 = vmatprep.subr.mxu0 0.0
        %1380 = vmatpush1.msra.mxu0 0.0
        %1381 = vmatprep.subr.mxu0 0.0
        %1382 = vmatpush1.msra.mxu0 0.0
        %1383 = vmatprep.subr.mxu0 0.0
        %1384 = vmatpush1.msra.mxu0 0.0
        %1385 = vmatprep.mubr.f32.mxu0 0.0
        %1386 = vmatmul.mubr.f32.gmra.mrb[0].mxu0 %v1316
        %v1387 = vpop.f32.mrb[0].mxu0
        %v1388 = vadd.f32 0.0, %v1387
        %v1389 = vpop.f32.mrb[0].mxu0
        %1390 = vmatprep.mubr.f32.mxu0 0.0
        %1391 = vmatmul.mubr.f32.gmra.mrb[0].mxu0 %v1319
        %v1392 = vpop.f32.mrb[0].mxu0
        %v1393 = vadd.f32 0.0, %v1392
        %v1394 = vpop.f32.mrb[0].mxu0
        %1395 = vdwg.mxu0
        %v1396 = vlaneseq
        %v1397 = vshrl.u32 %v1396, 7
        %v1398 = vsub.s32 5, %v1397
        %v1399 = vrot.slane %v290, %v1398
        %v1400 = vmul.f32 %v322, %v1399
        %v1401 = vmul.f32 %v327, %v1399
        %v1402 = vlaneseq
        %v1403 = vshrl.u32 %v1402, 7
        %v1404 = vsub.s32 2, %v1403
        %v1405 = vrot.slane %v290, %v1404
        %v1406 = vadd.f32 %v1405, %v1400
        %v1407 = vadd.f32 %v1405, %v1401
        %v1408 = vmul.f32 %v1406, %v1388
        %v1409 = vmul.f32 %v1407, %v1393
        %v1410 = vadd.f32 %v272, %v1408
        %v1411 = vadd.f32 %v273, %v1409
        %1412 = vst.msk [vmem:[#allocation2] sm:$0xff] %vm291, %v1410
        %1413 = vst.msk [vmem:[#allocation2 + $0x8] sm:$0xff] %vm291, %v1411
        %1414 = vrot.lane.b32.xlu0 %v649, 64
        %v1415 = vpop.permute.xlu0 %1414
        %1416 = vrot.lane.b32.xlu0 %v650, 64
        %v1417 = vpop.permute.xlu0 %1416
        %1420 = vrot.lane.b32.xlu0 %v629, 48
        %v1421 = vpop.permute.xlu0 %1420
        %1422 = vrot.lane.b32.xlu0 %v630, 48
        %v1423 = vpop.permute.xlu0 %1422
        %1428 = vrot.lane.b32.xlu0 %v587, 96
        %v1429 = vpop.permute.xlu0 %1428
        %1430 = vrot.lane.b32.xlu0 %v588, 96
        %v1431 = vpop.permute.xlu0 %1430
        %1436 = vrot.lane.b32.xlu0 %v625, 96
        %v1437 = vpop.permute.xlu0 %1436
        %1438 = vrot.lane.b32.xlu0 %v626, 96
        %v1439 = vpop.permute.xlu0 %1438
        %v1442 = vsel %vm291, %v1410, %v1415
        %v1443 = vsel %vm291, %v1411, %v1417
        %v1444 = vsel %vm1311, %v1442, %v1421
        %v1445 = vsel %vm1311, %v1443, %v1423
        %v1446 = vsel %vm972, %v1444, %v1429
        %v1447 = vsel %vm972, %v1445, %v1431
        %vm1448 = vcmask 654336
        %v1449 = vsel %vm1448, %v1446, %v1437
        %v1450 = vsel %vm1448, %v1447, %v1439
        %vm1451 = vcmask 785408
        %v1452 = vsel %vm1451, %v1449, 0.0
        %v1453 = vsel %vm1451, %v1450, 0.0
        %1454 = vst [vmem:[%s247] sm:$0xff] %v1452
        %1455 = vst [vmem:[%s247 + $0x8] sm:$0xff] %v1453
        %s1456 = sand.u32 %s147, 1
        %s1457 = scalar_lea.sflag [#allocation4], %s1456
        %s1458 = sand.u32 %s147, 1
        %s1459 = smul.addr %s1458, 16
        %s1460 = scalar_lea.vmem [#allocation3], %s1459
        // Predicated region
        $region45: #{tpu_custom_call.1} parent=39 // pred_check
          %p1461 = pneg %p157
        $region46: #{tpu_custom_call.1} parent=39 // pred_check_branch
          %1463 = sbr.rel (%p1461) target = $region48
        $region47: #{tpu_custom_call.1} parent=39 // pred_region
          %s1465 = ssub.s32 256, 256
          %1466 = vsyncadd %s1457, %s1465
          %s1467 = smul.addr %s19, 2
          %s1468 = smul.addr %s1467, 128
          %s1469 = scalar_lea.hbm %s5, %s1468
          %s1470 = sshll.u32 %s1460, 4
          %s1471 = int_to_ptr.vmem [resolvable:$true] %s1470
          %1476 = dma.vmem_to_hbm [thread:$0]  %s1471, 256, %s1469, %s1457, 128, 128, 8
        $region48: #{tpu_custom_call.1} parent=39 // pred_fallthru
          _
      $region40: #{tpu_custom_call.1} parent=5 // pred_fallthru
        _
      %p1477 = scmp.le.s32.totalorder 2, %s14
      // Predicated region
      $region49: #{tpu_custom_call.1} parent=5 // pred_check
        %p1478 = pneg %p1477
      $region50: #{tpu_custom_call.1} parent=5 // pred_check_branch
        %1480 = sbr.rel (%p1478) target = $region52
      $region51: #{tpu_custom_call.1} parent=5 // pred_region
        %s1481 = ssub.s32 %s14, 2
        // Predicated region
        $region53: #{tpu_custom_call.1} parent=51 // pred_check
          %p1482 = pneg %p163
        $region54: #{tpu_custom_call.1} parent=51 // pred_check_branch
          %1484 = sbr.rel (%p1482) target = $region56
        $region55: #{tpu_custom_call.1} parent=51 // pred_region
          %s1485 = sand.u32 %s148, 1
          %s1486 = scalar_lea.sflag [#allocation4], %s1485
          %s1487 = sand.u32 %s148, 1
          %s1488 = smul.addr %s1487, 16
          %s1489 = scalar_lea.vmem [#allocation3], %s1488
          %1490 = dma.done %s1486, 256
        $region56: #{tpu_custom_call.1} parent=51 // pred_fallthru
          _
      $region52: #{tpu_custom_call.1} parent=5 // pred_fallthru
        _
    $region6: #{tpu_custom_call.1} parent=1 // loop_footer
      %s18 = sadd.s32 1, %s14
    $region7: #{tpu_custom_call.1} parent=1 // loop_footer_branch
      %13 = sbr.rel target = $region3
    $region8: #{tpu_custom_call.1} parent=1 // loop_exit
      _
    %1491 = vsyncpa [#allocation4], 1
    %s1492 = scalar_lea.sflag [#allocation4], 1
    %1493 = vsyncpa %s1492, 1

</llo_original>
